<compile_context>
chip_gen: v6e
topology: v6e:2x2x1
jax: 0.10.0
libtpu: 0.0.40
codegen_flags: <defaults>
</compile_context>

<pallas_src>
import functools

import jax
import jax.numpy as jnp
import numpy as np
from jax import lax
from jax.experimental import pallas as pl
from jax.experimental.pallas import tpu as pltpu


def _ms_attention_kernel(xa_ref, xb_ref, wq_ref, wkv_ref, wo_ref, bo_ref, out_ref,
                         *, batch, n_a, n_b, heads, dim_head):
    f32 = jnp.float32
    inner = heads * dim_head
    c_dim = wo_ref.shape[1]
    mxu_dtype = wq_ref.dtype          # bf16 (or f32 if caller disabled the cast)

    # (1) Batch-flattened projections: two large MXU matmuls, f32 accumulation.
    #     Attention scale is already folded into wq.
    q_all = jnp.dot(xa_ref[...], wq_ref[...], preferred_element_type=f32)    # (B*Na, H*D)
    kv_all = jnp.dot(xb_ref[...], wkv_ref[...], preferred_element_type=f32)  # (B*Nb, 2*H*D)

    bias = bo_ref[...].astype(f32)                                           # (1, C)

    # Single (B*Na, C) f32 accumulator -> one lane-dense output store at the end.
    acc = jnp.zeros((batch * n_a, c_dim), f32)

    for h in range(heads):                    # static unroll over heads (H is small)
        sl = slice(h * dim_head, (h + 1) * dim_head)
        # Per-head slices; batch folded back as a leading (batched-matmul) axis.
        qh = q_all[:, sl].astype(mxu_dtype).reshape(batch, n_a, dim_head)     # (B, Na, D)
        kh = kv_all[:, sl].astype(mxu_dtype).reshape(batch, n_b, dim_head)    # (B, Nb, D)
        vh = kv_all[:, inner + h * dim_head:inner + (h + 1) * dim_head]
        vh = vh.astype(mxu_dtype).reshape(batch, n_b, dim_head)               # (B, Nb, D)

        # q @ k^T for the whole batch at once (contract last dims, no transpose).
        dots = jnp.einsum('bqd,bkd->bqk', qh, kh,
                          preferred_element_type=f32)                         # (B, Na, Nb)

        # Numerically-stable softmax in f32; divide replaced by EUP reciprocal.
        dots = dots - jnp.max(dots, axis=-1, keepdims=True)
        e = jnp.exp(dots)
        attn = e * pl.reciprocal(jnp.sum(e, axis=-1, keepdims=True), approx=True)

        oh = jnp.einsum('bqk,bkd->bqd', attn.astype(mxu_dtype), vh,
                        preferred_element_type=f32)                           # (B, Na, D)

        # Fused output projection: accumulate this head's contribution.
        acc = acc + jnp.dot(oh.reshape(batch * n_a, dim_head).astype(mxu_dtype),
                            wo_ref[sl, :],                                    # (D, C)
                            preferred_element_type=f32)                       # (B*Na, C)

    # One (B*Na, C) store; bias added once.
    out_ref[...] = (acc + bias).astype(out_ref.dtype)


def ms_attention(x_a, x_b, w_q, w_kv, w_out, b_out, *, heads, dim_head,
                 mxu_dtype=jnp.bfloat16):
    """x_a: (B, N_a, C), x_b: (B, N_b, C).
    w_q: (C, H*D), w_kv: (C, 2*H*D), w_out: (H*D, C), b_out: (C,)."""
    B, Na, C = x_a.shape
    _, Nb, _ = x_b.shape
    inner = heads * dim_head
    scale = float(C) ** (-0.5)     # PyTorch module scales by dim**-0.5 (not dim_head**-0.5)

    # Fold scale into W_q (in f32, before the bf16 cast).
    wq_scaled = w_q * scale

    # Flatten batch into rows; feed the MXU bf16 (softmax/accumulation stay f32 in-kernel).
    xa_flat = x_a.reshape(B * Na, C).astype(mxu_dtype)
    xb_flat = x_b.reshape(B * Nb, C).astype(mxu_dtype)
    wq_c = wq_scaled.astype(mxu_dtype)
    wkv_c = w_kv.astype(mxu_dtype)          # fused K/V weight: single 2*inner-lane RHS
    wo_c = w_out.astype(mxu_dtype)
    bo2 = b_out.reshape(1, C).astype(jnp.float32)

    kernel = functools.partial(_ms_attention_kernel, batch=B, n_a=Na, n_b=Nb,
                               heads=heads, dim_head=dim_head)

    out_flat = pl.pallas_call(
        kernel,
        out_shape=jax.ShapeDtypeStruct((B * Na, C), x_a.dtype),
        grid_spec=pltpu.PrefetchScalarGridSpec(
            num_scalar_prefetch=0,
            grid=(1,),   # whole problem in one invocation: no per-grid-step overhead
            in_specs=[
                pl.BlockSpec((B * Na, C), lambda i: (0, 0)),       # x_A (flattened)
                pl.BlockSpec((B * Nb, C), lambda i: (0, 0)),       # x_B (flattened)
                pl.BlockSpec((C, inner), lambda i: (0, 0)),        # W_q * scale
                pl.BlockSpec((C, 2 * inner), lambda i: (0, 0)),    # W_kv (fused)
                pl.BlockSpec((inner, C), lambda i: (0, 0)),        # W_out
                pl.BlockSpec((1, C), lambda i: (0, 0)),            # b_out
            ],
            out_specs=pl.BlockSpec((B * Na, C), lambda i: (0, 0)),
        ),
        compiler_params=pltpu.CompilerParams(dimension_semantics=("arbitrary",)),
    )(xa_flat, xb_flat, wq_c, wkv_c, wo_c, bo2)

    return out_flat.reshape(B, Na, C)


def ms_attention_ref(x_a, x_b, w_q, w_kv, w_out, b_out, *, heads, dim_head,
                     cast_dtype=None):
    """Pure-JAX reference mirroring the PyTorch forward (mask=None).

    If cast_dtype is given, inputs/weights are rounded through that dtype first
    (matching the kernel's MXU feed) while all math stays f32."""
    B, Na, C = x_a.shape
    inner = heads * dim_head
    scale = float(C) ** (-0.5)
    if cast_dtype is not None:
        q_ = lambda t: t.astype(cast_dtype).astype(jnp.float32)
        x_a, x_b, w_q, w_kv, w_out = map(q_, (x_a, x_b, w_q, w_kv, w_out))
    q = x_a @ w_q                                        # (B, Na, inner)
    kv = x_b @ w_kv                                      # (B, Nb, 2*inner)
    k, v = kv[..., :inner], kv[..., inner:]

    def split(t):
        b, n, _ = t.shape
        return t.reshape(b, n, heads, dim_head).transpose(0, 2, 1, 3)

    q, k, v = split(q), split(k), split(v)               # (B, H, N, D)
    dots = jnp.einsum('bhid,bhjd->bhij', q, k) * scale
    attn = jax.nn.softmax(dots, axis=-1)
    out = jnp.einsum('bhij,bhjd->bhid', attn, v)
    out = out.transpose(0, 2, 1, 3).reshape(B, Na, inner)
    return out @ w_out + b_out


if __name__ == "__main__":
    # Small, module-consistent shapes.
    B, Na, Nb = 2, 8, 8
    dim, heads, dim_head = 32, 4, 16
    inner = heads * dim_head

    key = jax.random.PRNGKey(0)
    k1, k2, k3, k4, k5, k6 = jax.random.split(key, 6)

    x_a = jax.random.normal(k1, (B, Na, dim), dtype=jnp.float32)
    x_b = jax.random.normal(k2, (B, Nb, dim), dtype=jnp.float32)

    # Deterministic "Linear" parameters, stored as (in, out).
    w_q = jax.random.normal(k3, (dim, inner), dtype=jnp.float32) * 0.1
    w_kv = jax.random.normal(k4, (dim, 2 * inner), dtype=jnp.float32) * 0.1
    w_out = jax.random.normal(k5, (inner, dim), dtype=jnp.float32) * 0.1
    b_out = jax.random.normal(k6, (dim,), dtype=jnp.float32) * 0.1

    out = ms_attention(x_a, x_b, w_q, w_kv, w_out, b_out,
                       heads=heads, dim_head=dim_head)
    out = jax.block_until_ready(out)

    # Reference with the same bf16 rounding of inputs/weights (math in f32);
    # tolerance covers the kernel's bf16 intermediate casts + approx reciprocal.
    ref = ms_attention_ref(x_a, x_b, w_q, w_kv, w_out, b_out,
                           heads=heads, dim_head=dim_head,
                           cast_dtype=jnp.bfloat16)
    np.testing.assert_allclose(np.asarray(out), np.asarray(ref),
                               rtol=2e-2, atol=2e-2)

    print("KERNEL_OK")
</pallas_src>

<mosaic_0001>
module attributes {stable_mosaic.version = 11 : i64} {
  func.func @_ms_attention_kernel(%arg0: i32, %arg1: memref<16x32xbf16, #tpu.memory_space<vmem>>, %arg2: memref<16x32xbf16, #tpu.memory_space<vmem>>, %arg3: memref<32x64xbf16, #tpu.memory_space<vmem>>, %arg4: memref<32x128xbf16, #tpu.memory_space<vmem>>, %arg5: memref<64x32xbf16, #tpu.memory_space<vmem>>, %arg6: memref<1x32xf32, #tpu.memory_space<vmem>>, %arg7: memref<16x32xf32, #tpu.memory_space<vmem>>) attributes {dimension_semantics = [#tpu.dimension_semantics<arbitrary>], iteration_bounds = array<i64: 1>, scalar_prefetch = 0 : i64, scratch_operands = 0 : i64, tpu.core_type = #tpu.core_type<tc>, window_params = [{pipeline_mode = #tpu.pipeline_mode<synchronous>, transform_indices = @transform_0, window_bounds = array<i64: 16, 32>}, {pipeline_mode = #tpu.pipeline_mode<synchronous>, transform_indices = @transform_1, window_bounds = array<i64: 16, 32>}, {pipeline_mode = #tpu.pipeline_mode<synchronous>, transform_indices = @transform_2, window_bounds = array<i64: 32, 64>}, {pipeline_mode = #tpu.pipeline_mode<synchronous>, transform_indices = @transform_3, window_bounds = array<i64: 32, 128>}, {pipeline_mode = #tpu.pipeline_mode<synchronous>, transform_indices = @transform_4, window_bounds = array<i64: 64, 32>}, {pipeline_mode = #tpu.pipeline_mode<synchronous>, transform_indices = @transform_5, window_bounds = array<i64: 1, 32>}, {pipeline_mode = #tpu.pipeline_mode<synchronous>, transform_indices = @transform_6, window_bounds = array<i64: 16, 32>}]} {
    %c0 = arith.constant 0 : index
    %c0_0 = arith.constant 0 : index
    %0 = vector.load %arg1[%c0, %c0_0] : memref<16x32xbf16, #tpu.memory_space<vmem>>, vector<16x32xbf16>
    %c0_1 = arith.constant 0 : index
    %c0_2 = arith.constant 0 : index
    %1 = vector.load %arg3[%c0_1, %c0_2] : memref<32x64xbf16, #tpu.memory_space<vmem>>, vector<32x64xbf16>
    %cst = arith.constant dense<0.000000e+00> : vector<16x64xf32>
    %2 = tpu.matmul %0, %1, %cst {dimension_numbers = #tpu.dot_dimension_numbers<[1], [0], [0], [1], [0, 0, 1, 1], [], []>} : vector<16x32xbf16>, vector<32x64xbf16>, vector<16x64xf32> -> vector<16x64xf32>
    %c0_3 = arith.constant 0 : index
    %c0_4 = arith.constant 0 : index
    %3 = vector.load %arg2[%c0_3, %c0_4] : memref<16x32xbf16, #tpu.memory_space<vmem>>, vector<16x32xbf16>
    %c0_5 = arith.constant 0 : index
    %c0_6 = arith.constant 0 : index
    %4 = vector.load %arg4[%c0_5, %c0_6] : memref<32x128xbf16, #tpu.memory_space<vmem>>, vector<32x128xbf16>
    %cst_7 = arith.constant dense<0.000000e+00> : vector<16x128xf32>
    %5 = tpu.matmul %3, %4, %cst_7 {dimension_numbers = #tpu.dot_dimension_numbers<[1], [0], [0], [1], [0, 0, 1, 1], [], []>} : vector<16x32xbf16>, vector<32x128xbf16>, vector<16x128xf32> -> vector<16x128xf32>
    %c0_8 = arith.constant 0 : index
    %c0_9 = arith.constant 0 : index
    %6 = vector.load %arg6[%c0_8, %c0_9] : memref<1x32xf32, #tpu.memory_space<vmem>>, vector<1x32xf32>
    %cst_10 = arith.constant 0.000000e+00 : f32
    %7 = vector.broadcast %cst_10 : f32 to vector<16x32xf32>
    %8 = vector.extract_strided_slice %2 {offsets = [0, 0], sizes = [16, 16], strides = [1, 1]} : vector<16x64xf32> to vector<16x16xf32>
    %9 = arith.truncf %8 : vector<16x16xf32> to vector<16x16xbf16>
    %10 = vector.shape_cast %9 : vector<16x16xbf16> to vector<2x8x16xbf16>
    %11 = vector.extract_strided_slice %5 {offsets = [0, 0], sizes = [16, 16], strides = [1, 1]} : vector<16x128xf32> to vector<16x16xf32>
    %12 = arith.truncf %11 : vector<16x16xf32> to vector<16x16xbf16>
    %13 = vector.shape_cast %12 : vector<16x16xbf16> to vector<2x8x16xbf16>
    %14 = vector.extract_strided_slice %5 {offsets = [0, 64], sizes = [16, 16], strides = [1, 1]} : vector<16x128xf32> to vector<16x16xf32>
    %15 = arith.truncf %14 : vector<16x16xf32> to vector<16x16xbf16>
    %16 = vector.shape_cast %15 : vector<16x16xbf16> to vector<2x8x16xbf16>
    "tpu.trace_start"() <{level = 10 : i32, message = "bqd,bkd->bqk"}> : () -> ()
    %cst_11 = arith.constant dense<0.000000e+00> : vector<2x8x8xf32>
    %17 = tpu.matmul %10, %13, %cst_11 {dimension_numbers = #tpu.dot_dimension_numbers<[2], [2], [1], [1], [0, 0, 0, 1, 1, 1], [0], [0]>} : vector<2x8x16xbf16>, vector<2x8x16xbf16>, vector<2x8x8xf32> -> vector<2x8x8xf32>
    "tpu.trace_stop"() : () -> ()
    %cst_12 = arith.constant dense<0xFF800000> : vector<2x8xf32>
    %18 = vector.multi_reduction <maximumf>, %17, %cst_12 [2] : vector<2x8x8xf32> to vector<2x8xf32>
    %19 = vector.shape_cast %18 : vector<2x8xf32> to vector<2x8x1xf32>
    %20 = vector.broadcast %19 : vector<2x8x1xf32> to vector<2x8x8xf32>
    %21 = arith.subf %17, %20 : vector<2x8x8xf32>
    %22 = math.exp %21 : vector<2x8x8xf32>
    %cst_13 = arith.constant dense<0.000000e+00> : vector<2x8xf32>
    %23 = vector.multi_reduction <add>, %22, %cst_13 [2] : vector<2x8x8xf32> to vector<2x8xf32>
    %24 = vector.shape_cast %23 : vector<2x8xf32> to vector<2x8x1xf32>
    %25 = tpu.reciprocal %24 {approx = true} : vector<2x8x1xf32> -> vector<2x8x1xf32>
    %26 = vector.broadcast %25 : vector<2x8x1xf32> to vector<2x8x8xf32>
    %27 = arith.mulf %22, %26 : vector<2x8x8xf32>
    %28 = arith.truncf %27 : vector<2x8x8xf32> to vector<2x8x8xbf16>
    "tpu.trace_start"() <{level = 10 : i32, message = "bqk,bkd->bqd"}> : () -> ()
    %cst_14 = arith.constant dense<0.000000e+00> : vector<2x8x16xf32>
    %29 = tpu.matmul %28, %16, %cst_14 {dimension_numbers = #tpu.dot_dimension_numbers<[2], [1], [1], [2], [0, 0, 0, 1, 1, 2], [0], [0]>} : vector<2x8x8xbf16>, vector<2x8x16xbf16>, vector<2x8x16xf32> -> vector<2x8x16xf32>
    "tpu.trace_stop"() : () -> ()
    %30 = vector.shape_cast %29 : vector<2x8x16xf32> to vector<16x16xf32>
    %31 = arith.truncf %30 : vector<16x16xf32> to vector<16x16xbf16>
    %c0_15 = arith.constant 0 : index
    %c0_16 = arith.constant 0 : index
    %32 = vector.load %arg5[%c0_15, %c0_16] : memref<64x32xbf16, #tpu.memory_space<vmem>>, vector<16x32xbf16>
    %cst_17 = arith.constant dense<0.000000e+00> : vector<16x32xf32>
    %33 = tpu.matmul %31, %32, %cst_17 {dimension_numbers = #tpu.dot_dimension_numbers<[1], [0], [0], [1], [0, 0, 1, 1], [], []>} : vector<16x16xbf16>, vector<16x32xbf16>, vector<16x32xf32> -> vector<16x32xf32>
    %34 = arith.addf %7, %33 : vector<16x32xf32>
    %35 = vector.extract_strided_slice %2 {offsets = [0, 16], sizes = [16, 16], strides = [1, 1]} : vector<16x64xf32> to vector<16x16xf32>
    %36 = arith.truncf %35 : vector<16x16xf32> to vector<16x16xbf16>
    %37 = vector.shape_cast %36 : vector<16x16xbf16> to vector<2x8x16xbf16>
    %38 = vector.extract_strided_slice %5 {offsets = [0, 16], sizes = [16, 16], strides = [1, 1]} : vector<16x128xf32> to vector<16x16xf32>
    %39 = arith.truncf %38 : vector<16x16xf32> to vector<16x16xbf16>
    %40 = vector.shape_cast %39 : vector<16x16xbf16> to vector<2x8x16xbf16>
    %41 = vector.extract_strided_slice %5 {offsets = [0, 80], sizes = [16, 16], strides = [1, 1]} : vector<16x128xf32> to vector<16x16xf32>
    %42 = arith.truncf %41 : vector<16x16xf32> to vector<16x16xbf16>
    %43 = vector.shape_cast %42 : vector<16x16xbf16> to vector<2x8x16xbf16>
    "tpu.trace_start"() <{level = 10 : i32, message = "bqd,bkd->bqk"}> : () -> ()
    %cst_18 = arith.constant dense<0.000000e+00> : vector<2x8x8xf32>
    %44 = tpu.matmul %37, %40, %cst_18 {dimension_numbers = #tpu.dot_dimension_numbers<[2], [2], [1], [1], [0, 0, 0, 1, 1, 1], [0], [0]>} : vector<2x8x16xbf16>, vector<2x8x16xbf16>, vector<2x8x8xf32> -> vector<2x8x8xf32>
    "tpu.trace_stop"() : () -> ()
    %cst_19 = arith.constant dense<0xFF800000> : vector<2x8xf32>
    %45 = vector.multi_reduction <maximumf>, %44, %cst_19 [2] : vector<2x8x8xf32> to vector<2x8xf32>
    %46 = vector.shape_cast %45 : vector<2x8xf32> to vector<2x8x1xf32>
    %47 = vector.broadcast %46 : vector<2x8x1xf32> to vector<2x8x8xf32>
    %48 = arith.subf %44, %47 : vector<2x8x8xf32>
    %49 = math.exp %48 : vector<2x8x8xf32>
    %cst_20 = arith.constant dense<0.000000e+00> : vector<2x8xf32>
    %50 = vector.multi_reduction <add>, %49, %cst_20 [2] : vector<2x8x8xf32> to vector<2x8xf32>
    %51 = vector.shape_cast %50 : vector<2x8xf32> to vector<2x8x1xf32>
    %52 = tpu.reciprocal %51 {approx = true} : vector<2x8x1xf32> -> vector<2x8x1xf32>
    %53 = vector.broadcast %52 : vector<2x8x1xf32> to vector<2x8x8xf32>
    %54 = arith.mulf %49, %53 : vector<2x8x8xf32>
    %55 = arith.truncf %54 : vector<2x8x8xf32> to vector<2x8x8xbf16>
    "tpu.trace_start"() <{level = 10 : i32, message = "bqk,bkd->bqd"}> : () -> ()
    %cst_21 = arith.constant dense<0.000000e+00> : vector<2x8x16xf32>
    %56 = tpu.matmul %55, %43, %cst_21 {dimension_numbers = #tpu.dot_dimension_numbers<[2], [1], [1], [2], [0, 0, 0, 1, 1, 2], [0], [0]>} : vector<2x8x8xbf16>, vector<2x8x16xbf16>, vector<2x8x16xf32> -> vector<2x8x16xf32>
    "tpu.trace_stop"() : () -> ()
    %57 = vector.shape_cast %56 : vector<2x8x16xf32> to vector<16x16xf32>
    %58 = arith.truncf %57 : vector<16x16xf32> to vector<16x16xbf16>
    %c16 = arith.constant 16 : index
    %c0_22 = arith.constant 0 : index
    %59 = vector.load %arg5[%c16, %c0_22] : memref<64x32xbf16, #tpu.memory_space<vmem>>, vector<16x32xbf16>
    %cst_23 = arith.constant dense<0.000000e+00> : vector<16x32xf32>
    %60 = tpu.matmul %58, %59, %cst_23 {dimension_numbers = #tpu.dot_dimension_numbers<[1], [0], [0], [1], [0, 0, 1, 1], [], []>} : vector<16x16xbf16>, vector<16x32xbf16>, vector<16x32xf32> -> vector<16x32xf32>
    %61 = arith.addf %34, %60 : vector<16x32xf32>
    %62 = vector.extract_strided_slice %2 {offsets = [0, 32], sizes = [16, 16], strides = [1, 1]} : vector<16x64xf32> to vector<16x16xf32>
    %63 = arith.truncf %62 : vector<16x16xf32> to vector<16x16xbf16>
    %64 = vector.shape_cast %63 : vector<16x16xbf16> to vector<2x8x16xbf16>
    %65 = vector.extract_strided_slice %5 {offsets = [0, 32], sizes = [16, 16], strides = [1, 1]} : vector<16x128xf32> to vector<16x16xf32>
    %66 = arith.truncf %65 : vector<16x16xf32> to vector<16x16xbf16>
    %67 = vector.shape_cast %66 : vector<16x16xbf16> to vector<2x8x16xbf16>
    %68 = vector.extract_strided_slice %5 {offsets = [0, 96], sizes = [16, 16], strides = [1, 1]} : vector<16x128xf32> to vector<16x16xf32>
    %69 = arith.truncf %68 : vector<16x16xf32> to vector<16x16xbf16>
    %70 = vector.shape_cast %69 : vector<16x16xbf16> to vector<2x8x16xbf16>
    "tpu.trace_start"() <{level = 10 : i32, message = "bqd,bkd->bqk"}> : () -> ()
    %cst_24 = arith.constant dense<0.000000e+00> : vector<2x8x8xf32>
    %71 = tpu.matmul %64, %67, %cst_24 {dimension_numbers = #tpu.dot_dimension_numbers<[2], [2], [1], [1], [0, 0, 0, 1, 1, 1], [0], [0]>} : vector<2x8x16xbf16>, vector<2x8x16xbf16>, vector<2x8x8xf32> -> vector<2x8x8xf32>
    "tpu.trace_stop"() : () -> ()
    %cst_25 = arith.constant dense<0xFF800000> : vector<2x8xf32>
    %72 = vector.multi_reduction <maximumf>, %71, %cst_25 [2] : vector<2x8x8xf32> to vector<2x8xf32>
    %73 = vector.shape_cast %72 : vector<2x8xf32> to vector<2x8x1xf32>
    %74 = vector.broadcast %73 : vector<2x8x1xf32> to vector<2x8x8xf32>
    %75 = arith.subf %71, %74 : vector<2x8x8xf32>
    %76 = math.exp %75 : vector<2x8x8xf32>
    %cst_26 = arith.constant dense<0.000000e+00> : vector<2x8xf32>
    %77 = vector.multi_reduction <add>, %76, %cst_26 [2] : vector<2x8x8xf32> to vector<2x8xf32>
    %78 = vector.shape_cast %77 : vector<2x8xf32> to vector<2x8x1xf32>
    %79 = tpu.reciprocal %78 {approx = true} : vector<2x8x1xf32> -> vector<2x8x1xf32>
    %80 = vector.broadcast %79 : vector<2x8x1xf32> to vector<2x8x8xf32>
    %81 = arith.mulf %76, %80 : vector<2x8x8xf32>
    %82 = arith.truncf %81 : vector<2x8x8xf32> to vector<2x8x8xbf16>
    "tpu.trace_start"() <{level = 10 : i32, message = "bqk,bkd->bqd"}> : () -> ()
    %cst_27 = arith.constant dense<0.000000e+00> : vector<2x8x16xf32>
    %83 = tpu.matmul %82, %70, %cst_27 {dimension_numbers = #tpu.dot_dimension_numbers<[2], [1], [1], [2], [0, 0, 0, 1, 1, 2], [0], [0]>} : vector<2x8x8xbf16>, vector<2x8x16xbf16>, vector<2x8x16xf32> -> vector<2x8x16xf32>
    "tpu.trace_stop"() : () -> ()
    %84 = vector.shape_cast %83 : vector<2x8x16xf32> to vector<16x16xf32>
    %85 = arith.truncf %84 : vector<16x16xf32> to vector<16x16xbf16>
    %c32 = arith.constant 32 : index
    %c0_28 = arith.constant 0 : index
    %86 = vector.load %arg5[%c32, %c0_28] : memref<64x32xbf16, #tpu.memory_space<vmem>>, vector<16x32xbf16>
    %cst_29 = arith.constant dense<0.000000e+00> : vector<16x32xf32>
    %87 = tpu.matmul %85, %86, %cst_29 {dimension_numbers = #tpu.dot_dimension_numbers<[1], [0], [0], [1], [0, 0, 1, 1], [], []>} : vector<16x16xbf16>, vector<16x32xbf16>, vector<16x32xf32> -> vector<16x32xf32>
    %88 = arith.addf %61, %87 : vector<16x32xf32>
    %89 = vector.extract_strided_slice %2 {offsets = [0, 48], sizes = [16, 16], strides = [1, 1]} : vector<16x64xf32> to vector<16x16xf32>
    %90 = arith.truncf %89 : vector<16x16xf32> to vector<16x16xbf16>
    %91 = vector.shape_cast %90 : vector<16x16xbf16> to vector<2x8x16xbf16>
    %92 = vector.extract_strided_slice %5 {offsets = [0, 48], sizes = [16, 16], strides = [1, 1]} : vector<16x128xf32> to vector<16x16xf32>
    %93 = arith.truncf %92 : vector<16x16xf32> to vector<16x16xbf16>
    %94 = vector.shape_cast %93 : vector<16x16xbf16> to vector<2x8x16xbf16>
    %95 = vector.extract_strided_slice %5 {offsets = [0, 112], sizes = [16, 16], strides = [1, 1]} : vector<16x128xf32> to vector<16x16xf32>
    %96 = arith.truncf %95 : vector<16x16xf32> to vector<16x16xbf16>
    %97 = vector.shape_cast %96 : vector<16x16xbf16> to vector<2x8x16xbf16>
    "tpu.trace_start"() <{level = 10 : i32, message = "bqd,bkd->bqk"}> : () -> ()
    %cst_30 = arith.constant dense<0.000000e+00> : vector<2x8x8xf32>
    %98 = tpu.matmul %91, %94, %cst_30 {dimension_numbers = #tpu.dot_dimension_numbers<[2], [2], [1], [1], [0, 0, 0, 1, 1, 1], [0], [0]>} : vector<2x8x16xbf16>, vector<2x8x16xbf16>, vector<2x8x8xf32> -> vector<2x8x8xf32>
    "tpu.trace_stop"() : () -> ()
    %cst_31 = arith.constant dense<0xFF800000> : vector<2x8xf32>
    %99 = vector.multi_reduction <maximumf>, %98, %cst_31 [2] : vector<2x8x8xf32> to vector<2x8xf32>
    %100 = vector.shape_cast %99 : vector<2x8xf32> to vector<2x8x1xf32>
    %101 = vector.broadcast %100 : vector<2x8x1xf32> to vector<2x8x8xf32>
    %102 = arith.subf %98, %101 : vector<2x8x8xf32>
    %103 = math.exp %102 : vector<2x8x8xf32>
    %cst_32 = arith.constant dense<0.000000e+00> : vector<2x8xf32>
    %104 = vector.multi_reduction <add>, %103, %cst_32 [2] : vector<2x8x8xf32> to vector<2x8xf32>
    %105 = vector.shape_cast %104 : vector<2x8xf32> to vector<2x8x1xf32>
    %106 = tpu.reciprocal %105 {approx = true} : vector<2x8x1xf32> -> vector<2x8x1xf32>
    %107 = vector.broadcast %106 : vector<2x8x1xf32> to vector<2x8x8xf32>
    %108 = arith.mulf %103, %107 : vector<2x8x8xf32>
    %109 = arith.truncf %108 : vector<2x8x8xf32> to vector<2x8x8xbf16>
    "tpu.trace_start"() <{level = 10 : i32, message = "bqk,bkd->bqd"}> : () -> ()
    %cst_33 = arith.constant dense<0.000000e+00> : vector<2x8x16xf32>
    %110 = tpu.matmul %109, %97, %cst_33 {dimension_numbers = #tpu.dot_dimension_numbers<[2], [1], [1], [2], [0, 0, 0, 1, 1, 2], [0], [0]>} : vector<2x8x8xbf16>, vector<2x8x16xbf16>, vector<2x8x16xf32> -> vector<2x8x16xf32>
    "tpu.trace_stop"() : () -> ()
    %111 = vector.shape_cast %110 : vector<2x8x16xf32> to vector<16x16xf32>
    %112 = arith.truncf %111 : vector<16x16xf32> to vector<16x16xbf16>
    %c48 = arith.constant 48 : index
    %c0_34 = arith.constant 0 : index
    %113 = vector.load %arg5[%c48, %c0_34] : memref<64x32xbf16, #tpu.memory_space<vmem>>, vector<16x32xbf16>
    %cst_35 = arith.constant dense<0.000000e+00> : vector<16x32xf32>
    %114 = tpu.matmul %112, %113, %cst_35 {dimension_numbers = #tpu.dot_dimension_numbers<[1], [0], [0], [1], [0, 0, 1, 1], [], []>} : vector<16x16xbf16>, vector<16x32xbf16>, vector<16x32xf32> -> vector<16x32xf32>
    %115 = arith.addf %88, %114 : vector<16x32xf32>
    %116 = vector.broadcast %6 : vector<1x32xf32> to vector<16x32xf32>
    %117 = arith.addf %115, %116 : vector<16x32xf32>
    %c0_36 = arith.constant 0 : index
    %c0_37 = arith.constant 0 : index
    %118 = vector.load %arg7[%c0_36, %c0_37] : memref<16x32xf32, #tpu.memory_space<vmem>>, vector<16x32xf32>
    tpu.vector_store %arg7[%c0_36, %c0_37], %117 {strides = array<i32>} : memref<16x32xf32, #tpu.memory_space<vmem>>, vector<16x32xf32>,
    return
  }
  func.func @transform_0(%arg0: i32) -> (i32, i32) {
    %c0_i32 = arith.constant 0 : i32
    %c0_i32_0 = arith.constant 0 : i32
    %c0_i32_1 = arith.constant 0 : i32
    return %c0_i32, %c0_i32_0 : i32, i32
  }
  func.func @transform_1(%arg0: i32) -> (i32, i32) {
    %c0_i32 = arith.constant 0 : i32
    %c0_i32_0 = arith.constant 0 : i32
    %c0_i32_1 = arith.constant 0 : i32
    return %c0_i32, %c0_i32_0 : i32, i32
  }
  func.func @transform_2(%arg0: i32) -> (i32, i32) {
    %c0_i32 = arith.constant 0 : i32
    %c0_i32_0 = arith.constant 0 : i32
    %c0_i32_1 = arith.constant 0 : i32
    return %c0_i32, %c0_i32_0 : i32, i32
  }
  func.func @transform_3(%arg0: i32) -> (i32, i32) {
    %c0_i32 = arith.constant 0 : i32
    %c0_i32_0 = arith.constant 0 : i32
    %c0_i32_1 = arith.constant 0 : i32
    return %c0_i32, %c0_i32_0 : i32, i32
  }
  func.func @transform_4(%arg0: i32) -> (i32, i32) {
    %c0_i32 = arith.constant 0 : i32
    %c0_i32_0 = arith.constant 0 : i32
    %c0_i32_1 = arith.constant 0 : i32
    return %c0_i32, %c0_i32_0 : i32, i32
  }
  func.func @transform_5(%arg0: i32) -> (i32, i32) {
    %c0_i32 = arith.constant 0 : i32
    %c0_i32_0 = arith.constant 0 : i32
    %c0_i32_1 = arith.constant 0 : i32
    return %c0_i32, %c0_i32_0 : i32, i32
  }
  func.func @transform_6(%arg0: i32) -> (i32, i32) {
    %c0_i32 = arith.constant 0 : i32
    %c0_i32_0 = arith.constant 0 : i32
    %c0_i32_1 = arith.constant 0 : i32
    return %c0_i32, %c0_i32_0 : i32, i32
  }
}

</mosaic_0001>

<llo_original>
// kernel: tpu_custom_call.1
$region0: #{tpu_custom_call.1}
  #allocation0 [shape = 'u32[]', space=smem, size = 0x4, offset = 0x4, fixed_abs, tag = 'smem constant byte address 0x4 - core index']
  #allocation1 [shape = 'u32[144,128]{1,0:T(1,128)}', space=vmem, size = 0x12000, scoped, tag = 'internal scratch']
  %s0 = inlined_call_operand.vmem [shape: bf16[16,32], index: 0, kind: input, shape index: {}]
  %s1 = inlined_call_operand.vmem [shape: bf16[16,32], index: 1, kind: input, shape index: {}]
  %s2 = inlined_call_operand.vmem [shape: bf16[32,64], index: 2, kind: input, shape index: {}]
  %s3 = inlined_call_operand.vmem [shape: bf16[32,128], index: 3, kind: input, shape index: {}]
  %s4 = inlined_call_operand.vmem [shape: bf16[64,32], index: 4, kind: input, shape index: {}]
  %s5 = inlined_call_operand.vmem [shape: f32[1,32], index: 5, kind: input, shape index: {}]
  %s6 = inlined_call_operand.hbm [shape: f32[16,32], index: 6, kind: output, shape index: {}]
  %s7 = sld [smem:[#allocation0]]
  $region34: #{tpu_custom_call.1} parent=0
    _
  %s9 = ssub.s32 1, %s7
  %s10 = scalar_select 0, %s9, %s7
  $region1: #{tpu_custom_call.1} parent=0
    #allocation2 [shape = 'u8[8192]{0}', space=vmem, size = 0x2000, scoped, tag = 'output window, operand 0, single buffered']
    #allocation3 [shape = 's32[1]{0}', space=sflag, size = 0x4, scoped, tag = 'scoped memory for tpu_custom_call.1']
    %11 = vsyncpa [#allocation3], 0
    // Predicated region
    $region2: #{tpu_custom_call.1} parent=1 // pred_check
      _
    $region3: #{tpu_custom_call.1} parent=1 // pred_check_branch
      %13 = sbr.rel (0) target = $region5
    $region4: #{tpu_custom_call.1} parent=1 // pred_region
      _
    $region5: #{tpu_custom_call.1} parent=1 // pred_fallthru
      _
    // Predicated region
    $region6: #{tpu_custom_call.1} parent=1 // pred_check
      _
    $region7: #{tpu_custom_call.1} parent=1 // pred_check_branch
      %15 = sbr.rel (0) target = $region9
    $region8: #{tpu_custom_call.1} parent=1 // pred_region
      _
    $region9: #{tpu_custom_call.1} parent=1 // pred_fallthru
      _
    // Predicated region
    $region10: #{tpu_custom_call.1} parent=1 // pred_check
      _
    $region11: #{tpu_custom_call.1} parent=1 // pred_check_branch
      %17 = sbr.rel (0) target = $region13
    $region12: #{tpu_custom_call.1} parent=1 // pred_region
      _
    $region13: #{tpu_custom_call.1} parent=1 // pred_fallthru
      _
    // Predicated region
    $region14: #{tpu_custom_call.1} parent=1 // pred_check
      _
    $region15: #{tpu_custom_call.1} parent=1 // pred_check_branch
      %19 = sbr.rel (0) target = $region17
    $region16: #{tpu_custom_call.1} parent=1 // pred_region
      _
    $region17: #{tpu_custom_call.1} parent=1 // pred_fallthru
      _
    // Predicated region
    $region18: #{tpu_custom_call.1} parent=1 // pred_check
      _
    $region19: #{tpu_custom_call.1} parent=1 // pred_check_branch
      %21 = sbr.rel (0) target = $region21
    $region20: #{tpu_custom_call.1} parent=1 // pred_region
      _
    $region21: #{tpu_custom_call.1} parent=1 // pred_fallthru
      _
    // Predicated region
    $region22: #{tpu_custom_call.1} parent=1 // pred_check
      _
    $region23: #{tpu_custom_call.1} parent=1 // pred_check_branch
      %23 = sbr.rel (0) target = $region25
    $region24: #{tpu_custom_call.1} parent=1 // pred_region
      _
    $region25: #{tpu_custom_call.1} parent=1 // pred_fallthru
      _
    %v25 = vld [vmem:[%s0] sm:$0xf]
    %v26 = vld [vmem:[%s0 + $0x4] sm:$0xf]
    %v27 = vld [vmem:[%s2] sm:$0xf]
    %v28 = vld [vmem:[%s2 + $0x4] sm:$0xf]
    %v29 = vld [vmem:[%s2 + $0x8] sm:$0xf]
    %v30 = vld [vmem:[%s2 + $0xc] sm:$0xf]
    %v33 = vunpack.c.l.b16 %v25
    %v34 = vunpack.c.l.b16 %v26
    %v35 = vpack.c.b16 %v34, %v33
    %v40 = vunpack.c.l.b16 %v27
    %v41 = vunpack.c.l.b16 %v28
    %v42 = vunpack.c.l.b16 %v29
    %v43 = vunpack.c.l.b16 %v30
    %v44 = vpack.c.b16 %v41, %v40
    %v45 = vpack.c.b16 %v43, %v42
    %vm48 = vcmask 261120
    %v50 = vsel %vm48, %v35, 0
    %52 = vmatprep.subr.bf16.mxu0 0
    %53 = vmatpush1.bf16.msra.mxu0 0
    %54 = vmatprep.subr.bf16.mxu0 0
    %55 = vmatpush1.bf16.msra.mxu0 0
    %56 = vmatprep.subr.bf16.mxu0 0
    %57 = vmatpush1.bf16.msra.mxu0 0
    %58 = vmatprep.subr.bf16.mxu0 0
    %59 = vmatpush1.bf16.msra.mxu0 0
    %60 = vmatprep.subr.bf16.mxu0 0
    %61 = vmatpush1.bf16.msra.mxu0 0
    %62 = vmatprep.subr.bf16.mxu0 0
    %63 = vmatpush1.bf16.msra.mxu0 0
    %64 = vmatprep.subr.bf16.mxu0 0
    %65 = vmatpush1.bf16.msra.mxu0 %v45
    %66 = vmatprep.subr.bf16.mxu0 0
    %67 = vmatpush1.bf16.msra.mxu0 %v44
    %68 = vmatprep.subr.bf16.mxu0 0
    %69 = vmatpush2.bf16.msra.mxu0 0
    %70 = vmatprep.subr.bf16.mxu0 0
    %71 = vmatpush2.bf16.msra.mxu0 0
    %72 = vmatprep.subr.bf16.mxu0 0
    %73 = vmatpush2.bf16.msra.mxu0 0
    %74 = vmatprep.subr.bf16.mxu0 0
    %75 = vmatpush2.bf16.msra.mxu0 0
    %76 = vmatprep.subr.bf16.mxu0 0
    %77 = vmatpush2.bf16.msra.mxu0 0
    %78 = vmatprep.subr.bf16.mxu0 0
    %79 = vmatpush2.bf16.msra.mxu0 0
    %80 = vmatprep.subr.bf16.mxu0 0
    %81 = vmatpush2.bf16.msra.mxu0 0
    %82 = vmatprep.subr.bf16.mxu0 0
    %83 = vmatpush2.bf16.msra.mxu0 0
    %84 = vmatprep.mubr.bf16.mxu0 0
    %85 = vmatmul.mubr.bf16.gmra.mxu0 %v50
    %v86 = vpop.f32.mrf.mxu0
    %v87 = vadd.f32 0.0, %v86
    %v88 = vpop.f32.mrf.mxu0
    %v89 = vpop.f32.mrf.mxu0
    %v90 = vadd.f32 0.0, %v89
    %v91 = vpop.f32.mrf.mxu0
    %92 = vdwg.mxu0
    %v93 = vld [vmem:[%s1] sm:$0xf]
    %v94 = vld [vmem:[%s1 + $0x4] sm:$0xf]
    %v95 = vld [vmem:[%s3] sm:$0xf]
    %v96 = vld [vmem:[%s3 + $0x4] sm:$0xf]
    %v97 = vld [vmem:[%s3 + $0x8] sm:$0xf]
    %v98 = vld [vmem:[%s3 + $0xc] sm:$0xf]
    %v101 = vunpack.c.l.b16 %v93
    %v102 = vunpack.c.l.b16 %v94
    %v103 = vpack.c.b16 %v102, %v101
    %v108 = vunpack.c.l.b16 %v95
    %v109 = vunpack.c.l.b16 %v96
    %v110 = vunpack.c.l.b16 %v97
    %v111 = vunpack.c.l.b16 %v98
    %v112 = vpack.c.b16 %v109, %v108
    %v113 = vpack.c.b16 %v111, %v110
    %v117 = vsel %vm48, %v103, 0
    %119 = vmatprep.subr.bf16.mxu0 0
    %120 = vmatpush1.bf16.msra.mxu0 0
    %121 = vmatprep.subr.bf16.mxu0 0
    %122 = vmatpush1.bf16.msra.mxu0 0
    %123 = vmatprep.subr.bf16.mxu0 0
    %124 = vmatpush1.bf16.msra.mxu0 0
    %125 = vmatprep.subr.bf16.mxu0 0
    %126 = vmatpush1.bf16.msra.mxu0 0
    %127 = vmatprep.subr.bf16.mxu0 0
    %128 = vmatpush1.bf16.msra.mxu0 0
    %129 = vmatprep.subr.bf16.mxu0 0
    %130 = vmatpush1.bf16.msra.mxu0 0
    %131 = vmatprep.subr.bf16.mxu0 0
    %132 = vmatpush1.bf16.msra.mxu0 %v113
    %133 = vmatprep.subr.bf16.mxu0 0
    %134 = vmatpush1.bf16.msra.mxu0 %v112
    %135 = vmatprep.subr.bf16.mxu0 0
    %136 = vmatpush2.bf16.msra.mxu0 0
    %137 = vmatprep.subr.bf16.mxu0 0
    %138 = vmatpush2.bf16.msra.mxu0 0
    %139 = vmatprep.subr.bf16.mxu0 0
    %140 = vmatpush2.bf16.msra.mxu0 0
    %141 = vmatprep.subr.bf16.mxu0 0
    %142 = vmatpush2.bf16.msra.mxu0 0
    %143 = vmatprep.subr.bf16.mxu0 0
    %144 = vmatpush2.bf16.msra.mxu0 0
    %145 = vmatprep.subr.bf16.mxu0 0
    %146 = vmatpush2.bf16.msra.mxu0 0
    %147 = vmatprep.subr.bf16.mxu0 0
    %148 = vmatpush2.bf16.msra.mxu0 0
    %149 = vmatprep.subr.bf16.mxu0 0
    %150 = vmatpush2.bf16.msra.mxu0 0
    %151 = vmatprep.mubr.bf16.mxu0 0
    %152 = vmatmul.mubr.bf16.gmra.mxu0 %v117
    %v153 = vpop.f32.mrf.mxu0
    %v154 = vadd.f32 0.0, %v153
    %v155 = vpop.f32.mrf.mxu0
    %v156 = vpop.f32.mrf.mxu0
    %v157 = vadd.f32 0.0, %v156
    %v158 = vpop.f32.mrf.mxu0
    %159 = vdwg.mxu0
    %v160 = vld [vmem:[%s5] sm:$0x1]
    %v161 = vpack.c.bf16 %v90, %v87
    %v163 = vunpack.c.l.b16 %v161
    %v164 = vunpack.c.h.b16 %v161
    %v165 = vpack.c.b16 %v163, %v163
    %v166 = vpack.c.b16 %v164, %v164
    %v167 = vpack.c.bf16 %v157, %v154
    %v169 = vunpack.c.l.b16 %v167
    %v170 = vunpack.c.h.b16 %v167
    %v171 = vpack.c.b16 %v169, %v169
    %v172 = vpack.c.b16 %v170, %v170
    %vm173 = vcmask 130048
    %v175 = vsel %vm173, %v165, 0
    %v178 = vsel %vm173, %v171, 0
    %180 = vmatprep.subr.bf16.mxu0 0
    %181 = vmatpush1.bf16.xpose.msra.mxu0 0
    %182 = vmatprep.subr.bf16.mxu0 0
    %183 = vmatpush1.bf16.xpose.msra.mxu0 0
    %184 = vmatprep.subr.bf16.mxu0 0
    %185 = vmatpush1.bf16.xpose.msra.mxu0 0
    %186 = vmatprep.subr.bf16.mxu0 0
    %187 = vmatpush1.bf16.xpose.msra.mxu0 0
    %188 = vmatprep.subr.bf16.mxu0 0
    %189 = vmatpush1.bf16.xpose.msra.mxu0 0
    %190 = vmatprep.subr.bf16.mxu0 0
    %191 = vmatpush1.bf16.xpose.msra.mxu0 0
    %192 = vmatprep.subr.bf16.mxu0 0
    %193 = vmatpush1.bf16.xpose.msra.mxu0 0
    %194 = vmatprep.subr.bf16.mxu0 0
    %195 = vmatpush1.bf16.xpose.msra.mxu0 %v178
    %196 = vmatprep.subr.bf16.mxu0 0
    %197 = vmatpush2.bf16.xpose.msra.mxu0 0
    %198 = vmatprep.subr.bf16.mxu0 0
    %199 = vmatpush2.bf16.xpose.msra.mxu0 0
    %200 = vmatprep.subr.bf16.mxu0 0
    %201 = vmatpush2.bf16.xpose.msra.mxu0 0
    %202 = vmatprep.subr.bf16.mxu0 0
    %203 = vmatpush2.bf16.xpose.msra.mxu0 0
    %204 = vmatprep.subr.bf16.mxu0 0
    %205 = vmatpush2.bf16.xpose.msra.mxu0 0
    %206 = vmatprep.subr.bf16.mxu0 0
    %207 = vmatpush2.bf16.xpose.msra.mxu0 0
    %208 = vmatprep.subr.bf16.mxu0 0
    %209 = vmatpush2.bf16.xpose.msra.mxu0 0
    %210 = vmatprep.subr.bf16.mxu0 0
    %211 = vmatpush2.bf16.xpose.msra.mxu0 0
    %212 = vmatprep.mubr.bf16.mxu0 0
    %213 = vmatmul.mubr.bf16.gmra.mxu0 %v175
    %v214 = vpop.f32.mrf.mxu0
    %v215 = vadd.f32 0.0, %v214
    %v216 = vpop.f32.mrf.mxu0
    %v217 = vpop.f32.mrf.mxu0
    %v218 = vpop.f32.mrf.mxu0
    %219 = vdwg.mxu0
    %v221 = vsel %vm173, %v166, 0
    %v224 = vsel %vm173, %v172, 0
    %226 = vmatprep.subr.bf16.mxu0 0
    %227 = vmatpush1.bf16.xpose.msra.mxu0 0
    %228 = vmatprep.subr.bf16.mxu0 0
    %229 = vmatpush1.bf16.xpose.msra.mxu0 0
    %230 = vmatprep.subr.bf16.mxu0 0
    %231 = vmatpush1.bf16.xpose.msra.mxu0 0
    %232 = vmatprep.subr.bf16.mxu0 0
    %233 = vmatpush1.bf16.xpose.msra.mxu0 0
    %234 = vmatprep.subr.bf16.mxu0 0
    %235 = vmatpush1.bf16.xpose.msra.mxu0 0
    %236 = vmatprep.subr.bf16.mxu0 0
    %237 = vmatpush1.bf16.xpose.msra.mxu0 0
    %238 = vmatprep.subr.bf16.mxu0 0
    %239 = vmatpush1.bf16.xpose.msra.mxu0 0
    %240 = vmatprep.subr.bf16.mxu0 0
    %241 = vmatpush1.bf16.xpose.msra.mxu0 %v224
    %242 = vmatprep.subr.bf16.mxu0 0
    %243 = vmatpush2.bf16.xpose.msra.mxu0 0
    %244 = vmatprep.subr.bf16.mxu0 0
    %245 = vmatpush2.bf16.xpose.msra.mxu0 0
    %246 = vmatprep.subr.bf16.mxu0 0
    %247 = vmatpush2.bf16.xpose.msra.mxu0 0
    %248 = vmatprep.subr.bf16.mxu0 0
    %249 = vmatpush2.bf16.xpose.msra.mxu0 0
    %250 = vmatprep.subr.bf16.mxu0 0
    %251 = vmatpush2.bf16.xpose.msra.mxu0 0
    %252 = vmatprep.subr.bf16.mxu0 0
    %253 = vmatpush2.bf16.xpose.msra.mxu0 0
    %254 = vmatprep.subr.bf16.mxu0 0
    %255 = vmatpush2.bf16.xpose.msra.mxu0 0
    %256 = vmatprep.subr.bf16.mxu0 0
    %257 = vmatpush2.bf16.xpose.msra.mxu0 0
    %258 = vmatprep.mubr.bf16.mxu0 0
    %259 = vmatmul.mubr.bf16.gmra.mxu0 %v221
    %v260 = vpop.f32.mrf.mxu0
    %v261 = vadd.f32 0.0, %v260
    %v262 = vpop.f32.mrf.mxu0
    %v263 = vpop.f32.mrf.mxu0
    %v264 = vpop.f32.mrf.mxu0
    %265 = vdwg.mxu0
    %vm266 = vcmask 64512
    %v267 = vsel %vm266, %v215, -inf
    %268 = vmax.xlane.f32.xlu0 %v267
    %v269 = vpop.xlane.xlu0 %268
    %v270 = vsel %vm266, %v261, -inf
    %271 = vmax.xlane.f32.xlu0 %v270
    %v272 = vpop.xlane.xlu0 %271
    %v273 = vsub.f32 %v215, %v269
    %v274 = vsub.f32 %v261, %v272
    %v275 = vmul.f32 %v273, 1.442695
    %v276 = vpow.pop %v275
    %v277 = vmul.f32 %v274, 1.442695
    %v278 = vpow.pop %v277
    %v279 = vsel %vm266, %v276, 0.0
    %280 = vadd.xlane.f32.xlu0 %v279
    %v281 = vpop.xlane.xlu0 %280
    %v282 = vsel %vm266, %v278, 0.0
    %283 = vadd.xlane.f32.xlu0 %v282
    %v284 = vpop.xlane.xlu0 %283
    %v285 = vrcp.pop %v281
    %v286 = vrcp.pop %v284
    %v287 = vmul.f32 %v276, %v285
    %v288 = vmul.f32 %v278, %v286
    %v289 = vpack.c.bf16 %v287, %v287
    %v290 = vpack.c.bf16 %v288, %v288
    %291 = vrot.lane.b32.xlu0 %v171, 64
    %v292 = vpop.permute.xlu0 %291
    %v294 = vsel %vm266, %v289, 0
    %vm296 = vcmask 1043456
    %v298 = vsel %vm296, %v292, 0
    %300 = vmatprep.subr.bf16.mxu0 0
    %301 = vmatpush1.bf16.msra.mxu0 0
    %302 = vmatprep.subr.bf16.mxu0 0
    %303 = vmatpush1.bf16.msra.mxu0 0
    %304 = vmatprep.subr.bf16.mxu0 0
    %305 = vmatpush1.bf16.msra.mxu0 0
    %306 = vmatprep.subr.bf16.mxu0 0
    %307 = vmatpush1.bf16.msra.mxu0 0
    %308 = vmatprep.subr.bf16.mxu0 0
    %309 = vmatpush1.bf16.msra.mxu0 0
    %310 = vmatprep.subr.bf16.mxu0 0
    %311 = vmatpush1.bf16.msra.mxu0 0
    %312 = vmatprep.subr.bf16.mxu0 0
    %313 = vmatpush1.bf16.msra.mxu0 0
    %314 = vmatprep.subr.bf16.mxu0 0
    %315 = vmatpush1.bf16.msra.mxu0 %v298
    %316 = vmatprep.subr.bf16.mxu0 0
    %317 = vmatpush2.bf16.msra.mxu0 0
    %318 = vmatprep.subr.bf16.mxu0 0
    %319 = vmatpush2.bf16.msra.mxu0 0
    %320 = vmatprep.subr.bf16.mxu0 0
    %321 = vmatpush2.bf16.msra.mxu0 0
    %322 = vmatprep.subr.bf16.mxu0 0
    %323 = vmatpush2.bf16.msra.mxu0 0
    %324 = vmatprep.subr.bf16.mxu0 0
    %325 = vmatpush2.bf16.msra.mxu0 0
    %326 = vmatprep.subr.bf16.mxu0 0
    %327 = vmatpush2.bf16.msra.mxu0 0
    %328 = vmatprep.subr.bf16.mxu0 0
    %329 = vmatpush2.bf16.msra.mxu0 0
    %330 = vmatprep.subr.bf16.mxu0 0
    %331 = vmatpush2.bf16.msra.mxu0 0
    %332 = vmatprep.mubr.bf16.mxu0 0
    %333 = vmatmul.mubr.bf16.gmra.mxu0 %v294
    %v334 = vpop.f32.mrf.mxu0
    %v335 = vadd.f32 0.0, %v334
    %v336 = vpop.f32.mrf.mxu0
    %v337 = vpop.f32.mrf.mxu0
    %v338 = vpop.f32.mrf.mxu0
    %339 = vdwg.mxu0
    %340 = vrot.lane.b32.xlu0 %v172, 64
    %v341 = vpop.permute.xlu0 %340
    %v343 = vsel %vm266, %v290, 0
    %v346 = vsel %vm296, %v341, 0
    %348 = vmatprep.subr.bf16.mxu0 0
    %349 = vmatpush1.bf16.msra.mxu0 0
    %350 = vmatprep.subr.bf16.mxu0 0
    %351 = vmatpush1.bf16.msra.mxu0 0
    %352 = vmatprep.subr.bf16.mxu0 0
    %353 = vmatpush1.bf16.msra.mxu0 0
    %354 = vmatprep.subr.bf16.mxu0 0
    %355 = vmatpush1.bf16.msra.mxu0 0
    %356 = vmatprep.subr.bf16.mxu0 0
    %357 = vmatpush1.bf16.msra.mxu0 0
    %358 = vmatprep.subr.bf16.mxu0 0
    %359 = vmatpush1.bf16.msra.mxu0 0
    %360 = vmatprep.subr.bf16.mxu0 0
    %361 = vmatpush1.bf16.msra.mxu0 0
    %362 = vmatprep.subr.bf16.mxu0 0
    %363 = vmatpush1.bf16.msra.mxu0 %v346
    %364 = vmatprep.subr.bf16.mxu0 0
    %365 = vmatpush2.bf16.msra.mxu0 0
    %366 = vmatprep.subr.bf16.mxu0 0
    %367 = vmatpush2.bf16.msra.mxu0 0
    %368 = vmatprep.subr.bf16.mxu0 0
    %369 = vmatpush2.bf16.msra.mxu0 0
    %370 = vmatprep.subr.bf16.mxu0 0
    %371 = vmatpush2.bf16.msra.mxu0 0
    %372 = vmatprep.subr.bf16.mxu0 0
    %373 = vmatpush2.bf16.msra.mxu0 0
    %374 = vmatprep.subr.bf16.mxu0 0
    %375 = vmatpush2.bf16.msra.mxu0 0
    %376 = vmatprep.subr.bf16.mxu0 0
    %377 = vmatpush2.bf16.msra.mxu0 0
    %378 = vmatprep.subr.bf16.mxu0 0
    %379 = vmatpush2.bf16.msra.mxu0 0
    %380 = vmatprep.mubr.bf16.mxu0 0
    %381 = vmatmul.mubr.bf16.gmra.mxu0 %v343
    %v382 = vpop.f32.mrf.mxu0
    %v383 = vadd.f32 0.0, %v382
    %v384 = vpop.f32.mrf.mxu0
    %v385 = vpop.f32.mrf.mxu0
    %v386 = vpop.f32.mrf.mxu0
    %387 = vdwg.mxu0
    %v388 = vpack.c.bf16 %v383, %v335
    %v389 = vld [vmem:[%s4] sm:$0xf]
    %v390 = vld [vmem:[%s4 + $0x4] sm:$0xf]
    %391 = vrot.lane.b32.xlu0 %v165, 112
    %v392 = vpop.permute.xlu0 %391
    %393 = vrot.lane.b32.xlu0 %v171, 112
    %v394 = vpop.permute.xlu0 %393
    %v396 = vsel %vm173, %v392, 0
    %v399 = vsel %vm173, %v394, 0
    %401 = vmatprep.subr.bf16.mxu0 0
    %402 = vmatpush1.bf16.xpose.msra.mxu0 0
    %403 = vmatprep.subr.bf16.mxu0 0
    %404 = vmatpush1.bf16.xpose.msra.mxu0 0
    %405 = vmatprep.subr.bf16.mxu0 0
    %406 = vmatpush1.bf16.xpose.msra.mxu0 0
    %407 = vmatprep.subr.bf16.mxu0 0
    %408 = vmatpush1.bf16.xpose.msra.mxu0 0
    %409 = vmatprep.subr.bf16.mxu0 0
    %410 = vmatpush1.bf16.xpose.msra.mxu0 0
    %411 = vmatprep.subr.bf16.mxu0 0
    %412 = vmatpush1.bf16.xpose.msra.mxu0 0
    %413 = vmatprep.subr.bf16.mxu0 0
    %414 = vmatpush1.bf16.xpose.msra.mxu0 0
    %415 = vmatprep.subr.bf16.mxu0 0
    %416 = vmatpush1.bf16.xpose.msra.mxu0 %v399
    %417 = vmatprep.subr.bf16.mxu0 0
    %418 = vmatpush2.bf16.xpose.msra.mxu0 0
    %419 = vmatprep.subr.bf16.mxu0 0
    %420 = vmatpush2.bf16.xpose.msra.mxu0 0
    %421 = vmatprep.subr.bf16.mxu0 0
    %422 = vmatpush2.bf16.xpose.msra.mxu0 0
    %423 = vmatprep.subr.bf16.mxu0 0
    %424 = vmatpush2.bf16.xpose.msra.mxu0 0
    %425 = vmatprep.subr.bf16.mxu0 0
    %426 = vmatpush2.bf16.xpose.msra.mxu0 0
    %427 = vmatprep.subr.bf16.mxu0 0
    %428 = vmatpush2.bf16.xpose.msra.mxu0 0
    %429 = vmatprep.subr.bf16.mxu0 0
    %430 = vmatpush2.bf16.xpose.msra.mxu0 0
    %431 = vmatprep.subr.bf16.mxu0 0
    %432 = vmatpush2.bf16.xpose.msra.mxu0 0
    %433 = vmatprep.mubr.bf16.mxu0 0
    %434 = vmatmul.mubr.bf16.gmra.mxu0 %v396
    %v435 = vpop.f32.mrf.mxu0
    %v436 = vadd.f32 0.0, %v435
    %v437 = vpop.f32.mrf.mxu0
    %v438 = vpop.f32.mrf.mxu0
    %v439 = vpop.f32.mrf.mxu0
    %440 = vdwg.mxu0
    %441 = vrot.lane.b32.xlu0 %v166, 112
    %v442 = vpop.permute.xlu0 %441
    %443 = vrot.lane.b32.xlu0 %v172, 112
    %v444 = vpop.permute.xlu0 %443
    %v446 = vsel %vm173, %v442, 0
    %v449 = vsel %vm173, %v444, 0
    %451 = vmatprep.subr.bf16.mxu0 0
    %452 = vmatpush1.bf16.xpose.msra.mxu0 0
    %453 = vmatprep.subr.bf16.mxu0 0
    %454 = vmatpush1.bf16.xpose.msra.mxu0 0
    %455 = vmatprep.subr.bf16.mxu0 0
    %456 = vmatpush1.bf16.xpose.msra.mxu0 0
    %457 = vmatprep.subr.bf16.mxu0 0
    %458 = vmatpush1.bf16.xpose.msra.mxu0 0
    %459 = vmatprep.subr.bf16.mxu0 0
    %460 = vmatpush1.bf16.xpose.msra.mxu0 0
    %461 = vmatprep.subr.bf16.mxu0 0
    %462 = vmatpush1.bf16.xpose.msra.mxu0 0
    %463 = vmatprep.subr.bf16.mxu0 0
    %464 = vmatpush1.bf16.xpose.msra.mxu0 0
    %465 = vmatprep.subr.bf16.mxu0 0
    %466 = vmatpush1.bf16.xpose.msra.mxu0 %v449
    %467 = vmatprep.subr.bf16.mxu0 0
    %468 = vmatpush2.bf16.xpose.msra.mxu0 0
    %469 = vmatprep.subr.bf16.mxu0 0
    %470 = vmatpush2.bf16.xpose.msra.mxu0 0
    %471 = vmatprep.subr.bf16.mxu0 0
    %472 = vmatpush2.bf16.xpose.msra.mxu0 0
    %473 = vmatprep.subr.bf16.mxu0 0
    %474 = vmatpush2.bf16.xpose.msra.mxu0 0
    %475 = vmatprep.subr.bf16.mxu0 0
    %476 = vmatpush2.bf16.xpose.msra.mxu0 0
    %477 = vmatprep.subr.bf16.mxu0 0
    %478 = vmatpush2.bf16.xpose.msra.mxu0 0
    %479 = vmatprep.subr.bf16.mxu0 0
    %480 = vmatpush2.bf16.xpose.msra.mxu0 0
    %481 = vmatprep.subr.bf16.mxu0 0
    %482 = vmatpush2.bf16.xpose.msra.mxu0 0
    %483 = vmatprep.mubr.bf16.mxu0 0
    %484 = vmatmul.mubr.bf16.gmra.mxu0 %v446
    %v485 = vpop.f32.mrf.mxu0
    %v486 = vadd.f32 0.0, %v485
    %v487 = vpop.f32.mrf.mxu0
    %v488 = vpop.f32.mrf.mxu0
    %v489 = vpop.f32.mrf.mxu0
    %490 = vdwg.mxu0
    %v491 = vsel %vm266, %v436, -inf
    %492 = vmax.xlane.f32.xlu0 %v491
    %v493 = vpop.xlane.xlu0 %492
    %v494 = vsel %vm266, %v486, -inf
    %495 = vmax.xlane.f32.xlu0 %v494
    %v496 = vpop.xlane.xlu0 %495
    %v497 = vsub.f32 %v436, %v493
    %v498 = vsub.f32 %v486, %v496
    %v499 = vmul.f32 %v497, 1.442695
    %v500 = vpow.pop %v499
    %v501 = vmul.f32 %v498, 1.442695
    %v502 = vpow.pop %v501
    %v503 = vsel %vm266, %v500, 0.0
    %504 = vadd.xlane.f32.xlu0 %v503
    %v505 = vpop.xlane.xlu0 %504
    %v506 = vsel %vm266, %v502, 0.0
    %507 = vadd.xlane.f32.xlu0 %v506
    %v508 = vpop.xlane.xlu0 %507
    %v509 = vrcp.pop %v505
    %v510 = vrcp.pop %v508
    %v511 = vmul.f32 %v500, %v509
    %v512 = vmul.f32 %v502, %v510
    %v513 = vpack.c.bf16 %v511, %v511
    %v514 = vpack.c.bf16 %v512, %v512
    %515 = vrot.lane.b32.xlu0 %v171, 48
    %v516 = vpop.permute.xlu0 %515
    %v518 = vsel %vm266, %v513, 0
    %v521 = vsel %vm296, %v516, 0
    %523 = vmatprep.subr.bf16.mxu0 0
    %524 = vmatpush1.bf16.msra.mxu0 0
    %525 = vmatprep.subr.bf16.mxu0 0
    %526 = vmatpush1.bf16.msra.mxu0 0
    %527 = vmatprep.subr.bf16.mxu0 0
    %528 = vmatpush1.bf16.msra.mxu0 0
    %529 = vmatprep.subr.bf16.mxu0 0
    %530 = vmatpush1.bf16.msra.mxu0 0
    %531 = vmatprep.subr.bf16.mxu0 0
    %532 = vmatpush1.bf16.msra.mxu0 0
    %533 = vmatprep.subr.bf16.mxu0 0
    %534 = vmatpush1.bf16.msra.mxu0 0
    %535 = vmatprep.subr.bf16.mxu0 0
    %536 = vmatpush1.bf16.msra.mxu0 0
    %537 = vmatprep.subr.bf16.mxu0 0
    %538 = vmatpush1.bf16.msra.mxu0 %v521
    %539 = vmatprep.subr.bf16.mxu0 0
    %540 = vmatpush2.bf16.msra.mxu0 0
    %541 = vmatprep.subr.bf16.mxu0 0
    %542 = vmatpush2.bf16.msra.mxu0 0
    %543 = vmatprep.subr.bf16.mxu0 0
    %544 = vmatpush2.bf16.msra.mxu0 0
    %545 = vmatprep.subr.bf16.mxu0 0
    %546 = vmatpush2.bf16.msra.mxu0 0
    %547 = vmatprep.subr.bf16.mxu0 0
    %548 = vmatpush2.bf16.msra.mxu0 0
    %549 = vmatprep.subr.bf16.mxu0 0
    %550 = vmatpush2.bf16.msra.mxu0 0
    %551 = vmatprep.subr.bf16.mxu0 0
    %552 = vmatpush2.bf16.msra.mxu0 0
    %553 = vmatprep.subr.bf16.mxu0 0
    %554 = vmatpush2.bf16.msra.mxu0 0
    %555 = vmatprep.mubr.bf16.mxu0 0
    %556 = vmatmul.mubr.bf16.gmra.mxu0 %v518
    %v557 = vpop.f32.mrf.mxu0
    %v558 = vadd.f32 0.0, %v557
    %v559 = vpop.f32.mrf.mxu0
    %v560 = vpop.f32.mrf.mxu0
    %v561 = vpop.f32.mrf.mxu0
    %562 = vdwg.mxu0
    %563 = vrot.lane.b32.xlu0 %v172, 48
    %v564 = vpop.permute.xlu0 %563
    %v566 = vsel %vm266, %v514, 0
    %v569 = vsel %vm296, %v564, 0
    %571 = vmatprep.subr.bf16.mxu0 0
    %572 = vmatpush1.bf16.msra.mxu0 0
    %573 = vmatprep.subr.bf16.mxu0 0
    %574 = vmatpush1.bf16.msra.mxu0 0
    %575 = vmatprep.subr.bf16.mxu0 0
    %576 = vmatpush1.bf16.msra.mxu0 0
    %577 = vmatprep.subr.bf16.mxu0 0
    %578 = vmatpush1.bf16.msra.mxu0 0
    %579 = vmatprep.subr.bf16.mxu0 0
    %580 = vmatpush1.bf16.msra.mxu0 0
    %581 = vmatprep.subr.bf16.mxu0 0
    %582 = vmatpush1.bf16.msra.mxu0 0
    %583 = vmatprep.subr.bf16.mxu0 0
    %584 = vmatpush1.bf16.msra.mxu0 0
    %585 = vmatprep.subr.bf16.mxu0 0
    %586 = vmatpush1.bf16.msra.mxu0 %v569
    %587 = vmatprep.subr.bf16.mxu0 0
    %588 = vmatpush2.bf16.msra.mxu0 0
    %589 = vmatprep.subr.bf16.mxu0 0
    %590 = vmatpush2.bf16.msra.mxu0 0
    %591 = vmatprep.subr.bf16.mxu0 0
    %592 = vmatpush2.bf16.msra.mxu0 0
    %593 = vmatprep.subr.bf16.mxu0 0
    %594 = vmatpush2.bf16.msra.mxu0 0
    %595 = vmatprep.subr.bf16.mxu0 0
    %596 = vmatpush2.bf16.msra.mxu0 0
    %597 = vmatprep.subr.bf16.mxu0 0
    %598 = vmatpush2.bf16.msra.mxu0 0
    %599 = vmatprep.subr.bf16.mxu0 0
    %600 = vmatpush2.bf16.msra.mxu0 0
    %601 = vmatprep.subr.bf16.mxu0 0
    %602 = vmatpush2.bf16.msra.mxu0 0
    %603 = vmatprep.mubr.bf16.mxu0 0
    %604 = vmatmul.mubr.bf16.gmra.mxu0 %v566
    %v605 = vpop.f32.mrf.mxu0
    %v606 = vadd.f32 0.0, %v605
    %v607 = vpop.f32.mrf.mxu0
    %v608 = vpop.f32.mrf.mxu0
    %v609 = vpop.f32.mrf.mxu0
    %610 = vdwg.mxu0
    %v611 = vpack.c.bf16 %v606, %v558
    %v612 = vld [vmem:[%s4 + $0x8] sm:$0xf]
    %v613 = vld [vmem:[%s4 + $0xc] sm:$0xf]
    %v616 = vunpack.c.l.b16 %v612
    %v617 = vunpack.c.l.b16 %v613
    %v618 = vpack.c.b16 %v617, %v616
    %v621 = vsel %vm173, %v611, 0
    %623 = vmatprep.subr.bf16.mxu0 0
    %624 = vmatpush1.bf16.msra.mxu0 0
    %625 = vmatprep.subr.bf16.mxu0 0
    %626 = vmatpush1.bf16.msra.mxu0 0
    %627 = vmatprep.subr.bf16.mxu0 0
    %628 = vmatpush1.bf16.msra.mxu0 0
    %629 = vmatprep.subr.bf16.mxu0 0
    %630 = vmatpush1.bf16.msra.mxu0 0
    %631 = vmatprep.subr.bf16.mxu0 0
    %632 = vmatpush1.bf16.msra.mxu0 0
    %633 = vmatprep.subr.bf16.mxu0 0
    %634 = vmatpush1.bf16.msra.mxu0 0
    %635 = vmatprep.subr.bf16.mxu0 0
    %636 = vmatpush1.bf16.msra.mxu0 0
    %637 = vmatprep.subr.bf16.mxu0 0
    %638 = vmatpush1.bf16.msra.mxu0 %v618
    %639 = vmatprep.subr.bf16.mxu0 0
    %640 = vmatpush2.bf16.msra.mxu0 0
    %641 = vmatprep.subr.bf16.mxu0 0
    %642 = vmatpush2.bf16.msra.mxu0 0
    %643 = vmatprep.subr.bf16.mxu0 0
    %644 = vmatpush2.bf16.msra.mxu0 0
    %645 = vmatprep.subr.bf16.mxu0 0
    %646 = vmatpush2.bf16.msra.mxu0 0
    %647 = vmatprep.subr.bf16.mxu0 0
    %648 = vmatpush2.bf16.msra.mxu0 0
    %649 = vmatprep.subr.bf16.mxu0 0
    %650 = vmatpush2.bf16.msra.mxu0 0
    %651 = vmatprep.subr.bf16.mxu0 0
    %652 = vmatpush2.bf16.msra.mxu0 0
    %653 = vmatprep.subr.bf16.mxu0 0
    %654 = vmatpush2.bf16.msra.mxu0 0
    %655 = vmatprep.mubr.bf16.mxu0 0
    %656 = vmatmul.mubr.bf16.gmra.mxu0 %v621
    %v657 = vpop.f32.mrf.mxu0
    %v658 = vadd.f32 0.0, %v657
    %v659 = vpop.f32.mrf.mxu0
    %v660 = vpop.f32.mrf.mxu0
    %v661 = vadd.f32 0.0, %v660
    %v662 = vpop.f32.mrf.mxu0
    %663 = vdwg.mxu0
    %v666 = vunpack.c.l.b16 %v389
    %v667 = vunpack.c.l.b16 %v390
    %v668 = vpack.c.b16 %v667, %v666
    %v671 = vsel %vm173, %v388, 0
    %673 = vmatprep.subr.bf16.mxu0 0
    %674 = vmatpush1.bf16.msra.mxu0 0
    %675 = vmatprep.subr.bf16.mxu0 0
    %676 = vmatpush1.bf16.msra.mxu0 0
    %677 = vmatprep.subr.bf16.mxu0 0
    %678 = vmatpush1.bf16.msra.mxu0 0
    %679 = vmatprep.subr.bf16.mxu0 0
    %680 = vmatpush1.bf16.msra.mxu0 0
    %681 = vmatprep.subr.bf16.mxu0 0
    %682 = vmatpush1.bf16.msra.mxu0 0
    %683 = vmatprep.subr.bf16.mxu0 0
    %684 = vmatpush1.bf16.msra.mxu0 0
    %685 = vmatprep.subr.bf16.mxu0 0
    %686 = vmatpush1.bf16.msra.mxu0 0
    %687 = vmatprep.subr.bf16.mxu0 0
    %688 = vmatpush1.bf16.msra.mxu0 %v668
    %689 = vmatprep.subr.bf16.mxu0 0
    %690 = vmatpush2.bf16.msra.mxu0 0
    %691 = vmatprep.subr.bf16.mxu0 0
    %692 = vmatpush2.bf16.msra.mxu0 0
    %693 = vmatprep.subr.bf16.mxu0 0
    %694 = vmatpush2.bf16.msra.mxu0 0
    %695 = vmatprep.subr.bf16.mxu0 0
    %696 = vmatpush2.bf16.msra.mxu0 0
    %697 = vmatprep.subr.bf16.mxu0 0
    %698 = vmatpush2.bf16.msra.mxu0 0
    %699 = vmatprep.subr.bf16.mxu0 0
    %700 = vmatpush2.bf16.msra.mxu0 0
    %701 = vmatprep.subr.bf16.mxu0 0
    %702 = vmatpush2.bf16.msra.mxu0 0
    %703 = vmatprep.subr.bf16.mxu0 0
    %704 = vmatpush2.bf16.msra.mxu0 0
    %705 = vmatprep.mubr.bf16.mxu0 0
    %706 = vmatmul.mubr.bf16.gmra.mxu0 %v671
    %v707 = vpop.f32.mrf.mxu0
    %v708 = vadd.f32 %v658, %v707
    %v709 = vpop.f32.mrf.mxu0
    %v710 = vpop.f32.mrf.mxu0
    %v711 = vadd.f32 %v661, %v710
    %v712 = vpop.f32.mrf.mxu0
    %713 = vdwg.mxu0
    %714 = vrot.lane.b32.xlu0 %v165, 96
    %v715 = vpop.permute.xlu0 %714
    %716 = vrot.lane.b32.xlu0 %v171, 96
    %v717 = vpop.permute.xlu0 %716
    %v719 = vsel %vm173, %v715, 0
    %v722 = vsel %vm173, %v717, 0
    %724 = vmatprep.subr.bf16.mxu0 0
    %725 = vmatpush1.bf16.xpose.msra.mxu0 0
    %726 = vmatprep.subr.bf16.mxu0 0
    %727 = vmatpush1.bf16.xpose.msra.mxu0 0
    %728 = vmatprep.subr.bf16.mxu0 0
    %729 = vmatpush1.bf16.xpose.msra.mxu0 0
    %730 = vmatprep.subr.bf16.mxu0 0
    %731 = vmatpush1.bf16.xpose.msra.mxu0 0
    %732 = vmatprep.subr.bf16.mxu0 0
    %733 = vmatpush1.bf16.xpose.msra.mxu0 0
    %734 = vmatprep.subr.bf16.mxu0 0
    %735 = vmatpush1.bf16.xpose.msra.mxu0 0
    %736 = vmatprep.subr.bf16.mxu0 0
    %737 = vmatpush1.bf16.xpose.msra.mxu0 0
    %738 = vmatprep.subr.bf16.mxu0 0
    %739 = vmatpush1.bf16.xpose.msra.mxu0 %v722
    %740 = vmatprep.subr.bf16.mxu0 0
    %741 = vmatpush2.bf16.xpose.msra.mxu0 0
    %742 = vmatprep.subr.bf16.mxu0 0
    %743 = vmatpush2.bf16.xpose.msra.mxu0 0
    %744 = vmatprep.subr.bf16.mxu0 0
    %745 = vmatpush2.bf16.xpose.msra.mxu0 0
    %746 = vmatprep.subr.bf16.mxu0 0
    %747 = vmatpush2.bf16.xpose.msra.mxu0 0
    %748 = vmatprep.subr.bf16.mxu0 0
    %749 = vmatpush2.bf16.xpose.msra.mxu0 0
    %750 = vmatprep.subr.bf16.mxu0 0
    %751 = vmatpush2.bf16.xpose.msra.mxu0 0
    %752 = vmatprep.subr.bf16.mxu0 0
    %753 = vmatpush2.bf16.xpose.msra.mxu0 0
    %754 = vmatprep.subr.bf16.mxu0 0
    %755 = vmatpush2.bf16.xpose.msra.mxu0 0
    %756 = vmatprep.mubr.bf16.mxu0 0
    %757 = vmatmul.mubr.bf16.gmra.mxu0 %v719
    %v758 = vpop.f32.mrf.mxu0
    %v759 = vadd.f32 0.0, %v758
    %v760 = vpop.f32.mrf.mxu0
    %v761 = vpop.f32.mrf.mxu0
    %v762 = vpop.f32.mrf.mxu0
    %763 = vdwg.mxu0
    %764 = vrot.lane.b32.xlu0 %v166, 96
    %v765 = vpop.permute.xlu0 %764
    %766 = vrot.lane.b32.xlu0 %v172, 96
    %v767 = vpop.permute.xlu0 %766
    %v769 = vsel %vm173, %v765, 0
    %v772 = vsel %vm173, %v767, 0
    %774 = vmatprep.subr.bf16.mxu0 0
    %775 = vmatpush1.bf16.xpose.msra.mxu0 0
    %776 = vmatprep.subr.bf16.mxu0 0
    %777 = vmatpush1.bf16.xpose.msra.mxu0 0
    %778 = vmatprep.subr.bf16.mxu0 0
    %779 = vmatpush1.bf16.xpose.msra.mxu0 0
    %780 = vmatprep.subr.bf16.mxu0 0
    %781 = vmatpush1.bf16.xpose.msra.mxu0 0
    %782 = vmatprep.subr.bf16.mxu0 0
    %783 = vmatpush1.bf16.xpose.msra.mxu0 0
    %784 = vmatprep.subr.bf16.mxu0 0
    %785 = vmatpush1.bf16.xpose.msra.mxu0 0
    %786 = vmatprep.subr.bf16.mxu0 0
    %787 = vmatpush1.bf16.xpose.msra.mxu0 0
    %788 = vmatprep.subr.bf16.mxu0 0
    %789 = vmatpush1.bf16.xpose.msra.mxu0 %v772
    %790 = vmatprep.subr.bf16.mxu0 0
    %791 = vmatpush2.bf16.xpose.msra.mxu0 0
    %792 = vmatprep.subr.bf16.mxu0 0
    %793 = vmatpush2.bf16.xpose.msra.mxu0 0
    %794 = vmatprep.subr.bf16.mxu0 0
    %795 = vmatpush2.bf16.xpose.msra.mxu0 0
    %796 = vmatprep.subr.bf16.mxu0 0
    %797 = vmatpush2.bf16.xpose.msra.mxu0 0
    %798 = vmatprep.subr.bf16.mxu0 0
    %799 = vmatpush2.bf16.xpose.msra.mxu0 0
    %800 = vmatprep.subr.bf16.mxu0 0
    %801 = vmatpush2.bf16.xpose.msra.mxu0 0
    %802 = vmatprep.subr.bf16.mxu0 0
    %803 = vmatpush2.bf16.xpose.msra.mxu0 0
    %804 = vmatprep.subr.bf16.mxu0 0
    %805 = vmatpush2.bf16.xpose.msra.mxu0 0
    %806 = vmatprep.mubr.bf16.mxu0 0
    %807 = vmatmul.mubr.bf16.gmra.mxu0 %v769
    %v808 = vpop.f32.mrf.mxu0
    %v809 = vadd.f32 0.0, %v808
    %v810 = vpop.f32.mrf.mxu0
    %v811 = vpop.f32.mrf.mxu0
    %v812 = vpop.f32.mrf.mxu0
    %813 = vdwg.mxu0
    %v814 = vsel %vm266, %v759, -inf
    %815 = vmax.xlane.f32.xlu0 %v814
    %v816 = vpop.xlane.xlu0 %815
    %v817 = vsel %vm266, %v809, -inf
    %818 = vmax.xlane.f32.xlu0 %v817
    %v819 = vpop.xlane.xlu0 %818
    %v820 = vsub.f32 %v759, %v816
    %v821 = vsub.f32 %v809, %v819
    %v822 = vmul.f32 %v820, 1.442695
    %v823 = vpow.pop %v822
    %v824 = vmul.f32 %v821, 1.442695
    %v825 = vpow.pop %v824
    %v826 = vsel %vm266, %v823, 0.0
    %827 = vadd.xlane.f32.xlu0 %v826
    %v828 = vpop.xlane.xlu0 %827
    %v829 = vsel %vm266, %v825, 0.0
    %830 = vadd.xlane.f32.xlu0 %v829
    %v831 = vpop.xlane.xlu0 %830
    %v832 = vrcp.pop %v828
    %v833 = vrcp.pop %v831
    %v834 = vmul.f32 %v823, %v832
    %v835 = vmul.f32 %v825, %v833
    %v836 = vpack.c.bf16 %v834, %v834
    %v837 = vpack.c.bf16 %v835, %v835
    %838 = vrot.lane.b32.xlu0 %v171, 32
    %v839 = vpop.permute.xlu0 %838
    %v841 = vsel %vm266, %v836, 0
    %v844 = vsel %vm296, %v839, 0
    %846 = vmatprep.subr.bf16.mxu0 0
    %847 = vmatpush1.bf16.msra.mxu0 0
    %848 = vmatprep.subr.bf16.mxu0 0
    %849 = vmatpush1.bf16.msra.mxu0 0
    %850 = vmatprep.subr.bf16.mxu0 0
    %851 = vmatpush1.bf16.msra.mxu0 0
    %852 = vmatprep.subr.bf16.mxu0 0
    %853 = vmatpush1.bf16.msra.mxu0 0
    %854 = vmatprep.subr.bf16.mxu0 0
    %855 = vmatpush1.bf16.msra.mxu0 0
    %856 = vmatprep.subr.bf16.mxu0 0
    %857 = vmatpush1.bf16.msra.mxu0 0
    %858 = vmatprep.subr.bf16.mxu0 0
    %859 = vmatpush1.bf16.msra.mxu0 0
    %860 = vmatprep.subr.bf16.mxu0 0
    %861 = vmatpush1.bf16.msra.mxu0 %v844
    %862 = vmatprep.subr.bf16.mxu0 0
    %863 = vmatpush2.bf16.msra.mxu0 0
    %864 = vmatprep.subr.bf16.mxu0 0
    %865 = vmatpush2.bf16.msra.mxu0 0
    %866 = vmatprep.subr.bf16.mxu0 0
    %867 = vmatpush2.bf16.msra.mxu0 0
    %868 = vmatprep.subr.bf16.mxu0 0
    %869 = vmatpush2.bf16.msra.mxu0 0
    %870 = vmatprep.subr.bf16.mxu0 0
    %871 = vmatpush2.bf16.msra.mxu0 0
    %872 = vmatprep.subr.bf16.mxu0 0
    %873 = vmatpush2.bf16.msra.mxu0 0
    %874 = vmatprep.subr.bf16.mxu0 0
    %875 = vmatpush2.bf16.msra.mxu0 0
    %876 = vmatprep.subr.bf16.mxu0 0
    %877 = vmatpush2.bf16.msra.mxu0 0
    %878 = vmatprep.mubr.bf16.mxu0 0
    %879 = vmatmul.mubr.bf16.gmra.mxu0 %v841
    %v880 = vpop.f32.mrf.mxu0
    %v881 = vadd.f32 0.0, %v880
    %v882 = vpop.f32.mrf.mxu0
    %v883 = vpop.f32.mrf.mxu0
    %v884 = vpop.f32.mrf.mxu0
    %885 = vdwg.mxu0
    %886 = vrot.lane.b32.xlu0 %v172, 32
    %v887 = vpop.permute.xlu0 %886
    %v889 = vsel %vm266, %v837, 0
    %v892 = vsel %vm296, %v887, 0
    %894 = vmatprep.subr.bf16.mxu0 0
    %895 = vmatpush1.bf16.msra.mxu0 0
    %896 = vmatprep.subr.bf16.mxu0 0
    %897 = vmatpush1.bf16.msra.mxu0 0
    %898 = vmatprep.subr.bf16.mxu0 0
    %899 = vmatpush1.bf16.msra.mxu0 0
    %900 = vmatprep.subr.bf16.mxu0 0
    %901 = vmatpush1.bf16.msra.mxu0 0
    %902 = vmatprep.subr.bf16.mxu0 0
    %903 = vmatpush1.bf16.msra.mxu0 0
    %904 = vmatprep.subr.bf16.mxu0 0
    %905 = vmatpush1.bf16.msra.mxu0 0
    %906 = vmatprep.subr.bf16.mxu0 0
    %907 = vmatpush1.bf16.msra.mxu0 0
    %908 = vmatprep.subr.bf16.mxu0 0
    %909 = vmatpush1.bf16.msra.mxu0 %v892
    %910 = vmatprep.subr.bf16.mxu0 0
    %911 = vmatpush2.bf16.msra.mxu0 0
    %912 = vmatprep.subr.bf16.mxu0 0
    %913 = vmatpush2.bf16.msra.mxu0 0
    %914 = vmatprep.subr.bf16.mxu0 0
    %915 = vmatpush2.bf16.msra.mxu0 0
    %916 = vmatprep.subr.bf16.mxu0 0
    %917 = vmatpush2.bf16.msra.mxu0 0
    %918 = vmatprep.subr.bf16.mxu0 0
    %919 = vmatpush2.bf16.msra.mxu0 0
    %920 = vmatprep.subr.bf16.mxu0 0
    %921 = vmatpush2.bf16.msra.mxu0 0
    %922 = vmatprep.subr.bf16.mxu0 0
    %923 = vmatpush2.bf16.msra.mxu0 0
    %924 = vmatprep.subr.bf16.mxu0 0
    %925 = vmatpush2.bf16.msra.mxu0 0
    %926 = vmatprep.mubr.bf16.mxu0 0
    %927 = vmatmul.mubr.bf16.gmra.mxu0 %v889
    %v928 = vpop.f32.mrf.mxu0
    %v929 = vadd.f32 0.0, %v928
    %v930 = vpop.f32.mrf.mxu0
    %v931 = vpop.f32.mrf.mxu0
    %v932 = vpop.f32.mrf.mxu0
    %933 = vdwg.mxu0
    %v934 = vpack.c.bf16 %v929, %v881
    %v935 = vld [vmem:[%s4 + $0x10] sm:$0xf]
    %v936 = vld [vmem:[%s4 + $0x14] sm:$0xf]
    %v939 = vunpack.c.l.b16 %v935
    %v940 = vunpack.c.l.b16 %v936
    %v941 = vpack.c.b16 %v940, %v939
    %v944 = vsel %vm173, %v934, 0
    %946 = vmatprep.subr.bf16.mxu0 0
    %947 = vmatpush1.bf16.msra.mxu0 0
    %948 = vmatprep.subr.bf16.mxu0 0
    %949 = vmatpush1.bf16.msra.mxu0 0
    %950 = vmatprep.subr.bf16.mxu0 0
    %951 = vmatpush1.bf16.msra.mxu0 0
    %952 = vmatprep.subr.bf16.mxu0 0
    %953 = vmatpush1.bf16.msra.mxu0 0
    %954 = vmatprep.subr.bf16.mxu0 0
    %955 = vmatpush1.bf16.msra.mxu0 0
    %956 = vmatprep.subr.bf16.mxu0 0
    %957 = vmatpush1.bf16.msra.mxu0 0
    %958 = vmatprep.subr.bf16.mxu0 0
    %959 = vmatpush1.bf16.msra.mxu0 0
    %960 = vmatprep.subr.bf16.mxu0 0
    %961 = vmatpush1.bf16.msra.mxu0 %v941
    %962 = vmatprep.subr.bf16.mxu0 0
    %963 = vmatpush2.bf16.msra.mxu0 0
    %964 = vmatprep.subr.bf16.mxu0 0
    %965 = vmatpush2.bf16.msra.mxu0 0
    %966 = vmatprep.subr.bf16.mxu0 0
    %967 = vmatpush2.bf16.msra.mxu0 0
    %968 = vmatprep.subr.bf16.mxu0 0
    %969 = vmatpush2.bf16.msra.mxu0 0
    %970 = vmatprep.subr.bf16.mxu0 0
    %971 = vmatpush2.bf16.msra.mxu0 0
    %972 = vmatprep.subr.bf16.mxu0 0
    %973 = vmatpush2.bf16.msra.mxu0 0
    %974 = vmatprep.subr.bf16.mxu0 0
    %975 = vmatpush2.bf16.msra.mxu0 0
    %976 = vmatprep.subr.bf16.mxu0 0
    %977 = vmatpush2.bf16.msra.mxu0 0
    %978 = vmatprep.mubr.bf16.mxu0 0
    %979 = vmatmul.mubr.bf16.gmra.mxu0 %v944
    %v980 = vpop.f32.mrf.mxu0
    %v981 = vadd.f32 0.0, %v980
    %v982 = vpop.f32.mrf.mxu0
    %v983 = vpop.f32.mrf.mxu0
    %v984 = vadd.f32 0.0, %v983
    %v985 = vpop.f32.mrf.mxu0
    %986 = vdwg.mxu0
    %v987 = vadd.f32 %v708, %v981
    %v988 = vadd.f32 %v711, %v984
    %989 = vrot.lane.b32.xlu0 %v165, 80
    %v990 = vpop.permute.xlu0 %989
    %991 = vrot.lane.b32.xlu0 %v171, 80
    %v992 = vpop.permute.xlu0 %991
    %v994 = vsel %vm173, %v990, 0
    %v997 = vsel %vm173, %v992, 0
    %999 = vmatprep.subr.bf16.mxu0 0
    %1000 = vmatpush1.bf16.xpose.msra.mxu0 0
    %1001 = vmatprep.subr.bf16.mxu0 0
    %1002 = vmatpush1.bf16.xpose.msra.mxu0 0
    %1003 = vmatprep.subr.bf16.mxu0 0
    %1004 = vmatpush1.bf16.xpose.msra.mxu0 0
    %1005 = vmatprep.subr.bf16.mxu0 0
    %1006 = vmatpush1.bf16.xpose.msra.mxu0 0
    %1007 = vmatprep.subr.bf16.mxu0 0
    %1008 = vmatpush1.bf16.xpose.msra.mxu0 0
    %1009 = vmatprep.subr.bf16.mxu0 0
    %1010 = vmatpush1.bf16.xpose.msra.mxu0 0
    %1011 = vmatprep.subr.bf16.mxu0 0
    %1012 = vmatpush1.bf16.xpose.msra.mxu0 0
    %1013 = vmatprep.subr.bf16.mxu0 0
    %1014 = vmatpush1.bf16.xpose.msra.mxu0 %v997
    %1015 = vmatprep.subr.bf16.mxu0 0
    %1016 = vmatpush2.bf16.xpose.msra.mxu0 0
    %1017 = vmatprep.subr.bf16.mxu0 0
    %1018 = vmatpush2.bf16.xpose.msra.mxu0 0
    %1019 = vmatprep.subr.bf16.mxu0 0
    %1020 = vmatpush2.bf16.xpose.msra.mxu0 0
    %1021 = vmatprep.subr.bf16.mxu0 0
    %1022 = vmatpush2.bf16.xpose.msra.mxu0 0
    %1023 = vmatprep.subr.bf16.mxu0 0
    %1024 = vmatpush2.bf16.xpose.msra.mxu0 0
    %1025 = vmatprep.subr.bf16.mxu0 0
    %1026 = vmatpush2.bf16.xpose.msra.mxu0 0
    %1027 = vmatprep.subr.bf16.mxu0 0
    %1028 = vmatpush2.bf16.xpose.msra.mxu0 0
    %1029 = vmatprep.subr.bf16.mxu0 0
    %1030 = vmatpush2.bf16.xpose.msra.mxu0 0
    %1031 = vmatprep.mubr.bf16.mxu0 0
    %1032 = vmatmul.mubr.bf16.gmra.mxu0 %v994
    %v1033 = vpop.f32.mrf.mxu0
    %v1034 = vadd.f32 0.0, %v1033
    %v1035 = vpop.f32.mrf.mxu0
    %v1036 = vpop.f32.mrf.mxu0
    %v1037 = vpop.f32.mrf.mxu0
    %1038 = vdwg.mxu0
    %1039 = vrot.lane.b32.xlu0 %v166, 80
    %v1040 = vpop.permute.xlu0 %1039
    %1041 = vrot.lane.b32.xlu0 %v172, 80
    %v1042 = vpop.permute.xlu0 %1041
    %v1044 = vsel %vm173, %v1040, 0
    %v1047 = vsel %vm173, %v1042, 0
    %1049 = vmatprep.subr.bf16.mxu0 0
    %1050 = vmatpush1.bf16.xpose.msra.mxu0 0
    %1051 = vmatprep.subr.bf16.mxu0 0
    %1052 = vmatpush1.bf16.xpose.msra.mxu0 0
    %1053 = vmatprep.subr.bf16.mxu0 0
    %1054 = vmatpush1.bf16.xpose.msra.mxu0 0
    %1055 = vmatprep.subr.bf16.mxu0 0
    %1056 = vmatpush1.bf16.xpose.msra.mxu0 0
    %1057 = vmatprep.subr.bf16.mxu0 0
    %1058 = vmatpush1.bf16.xpose.msra.mxu0 0
    %1059 = vmatprep.subr.bf16.mxu0 0
    %1060 = vmatpush1.bf16.xpose.msra.mxu0 0
    %1061 = vmatprep.subr.bf16.mxu0 0
    %1062 = vmatpush1.bf16.xpose.msra.mxu0 0
    %1063 = vmatprep.subr.bf16.mxu0 0
    %1064 = vmatpush1.bf16.xpose.msra.mxu0 %v1047
    %1065 = vmatprep.subr.bf16.mxu0 0
    %1066 = vmatpush2.bf16.xpose.msra.mxu0 0
    %1067 = vmatprep.subr.bf16.mxu0 0
    %1068 = vmatpush2.bf16.xpose.msra.mxu0 0
    %1069 = vmatprep.subr.bf16.mxu0 0
    %1070 = vmatpush2.bf16.xpose.msra.mxu0 0
    %1071 = vmatprep.subr.bf16.mxu0 0
    %1072 = vmatpush2.bf16.xpose.msra.mxu0 0
    %1073 = vmatprep.subr.bf16.mxu0 0
    %1074 = vmatpush2.bf16.xpose.msra.mxu0 0
    %1075 = vmatprep.subr.bf16.mxu0 0
    %1076 = vmatpush2.bf16.xpose.msra.mxu0 0
    %1077 = vmatprep.subr.bf16.mxu0 0
    %1078 = vmatpush2.bf16.xpose.msra.mxu0 0
    %1079 = vmatprep.subr.bf16.mxu0 0
    %1080 = vmatpush2.bf16.xpose.msra.mxu0 0
    %1081 = vmatprep.mubr.bf16.mxu0 0
    %1082 = vmatmul.mubr.bf16.gmra.mxu0 %v1044
    %v1083 = vpop.f32.mrf.mxu0
    %v1084 = vadd.f32 0.0, %v1083
    %v1085 = vpop.f32.mrf.mxu0
    %v1086 = vpop.f32.mrf.mxu0
    %v1087 = vpop.f32.mrf.mxu0
    %1088 = vdwg.mxu0
    %v1089 = vsel %vm266, %v1034, -inf
    %1090 = vmax.xlane.f32.xlu0 %v1089
    %v1091 = vpop.xlane.xlu0 %1090
    %v1092 = vsel %vm266, %v1084, -inf
    %1093 = vmax.xlane.f32.xlu0 %v1092
    %v1094 = vpop.xlane.xlu0 %1093
    %v1095 = vsub.f32 %v1034, %v1091
    %v1096 = vsub.f32 %v1084, %v1094
    %v1097 = vmul.f32 %v1095, 1.442695
    %v1098 = vpow.pop %v1097
    %v1099 = vmul.f32 %v1096, 1.442695
    %v1100 = vpow.pop %v1099
    %v1101 = vsel %vm266, %v1098, 0.0
    %1102 = vadd.xlane.f32.xlu0 %v1101
    %v1103 = vpop.xlane.xlu0 %1102
    %v1104 = vsel %vm266, %v1100, 0.0
    %1105 = vadd.xlane.f32.xlu0 %v1104
    %v1106 = vpop.xlane.xlu0 %1105
    %v1107 = vrcp.pop %v1103
    %v1108 = vrcp.pop %v1106
    %v1109 = vmul.f32 %v1098, %v1107
    %v1110 = vmul.f32 %v1100, %v1108
    %v1111 = vpack.c.bf16 %v1109, %v1109
    %v1112 = vpack.c.bf16 %v1110, %v1110
    %1113 = vrot.lane.b32.xlu0 %v171, 16
    %v1114 = vpop.permute.xlu0 %1113
    %v1116 = vsel %vm266, %v1111, 0
    %v1119 = vsel %vm296, %v1114, 0
    %1121 = vmatprep.subr.bf16.mxu0 0
    %1122 = vmatpush1.bf16.msra.mxu0 0
    %1123 = vmatprep.subr.bf16.mxu0 0
    %1124 = vmatpush1.bf16.msra.mxu0 0
    %1125 = vmatprep.subr.bf16.mxu0 0
    %1126 = vmatpush1.bf16.msra.mxu0 0
    %1127 = vmatprep.subr.bf16.mxu0 0
    %1128 = vmatpush1.bf16.msra.mxu0 0
    %1129 = vmatprep.subr.bf16.mxu0 0
    %1130 = vmatpush1.bf16.msra.mxu0 0
    %1131 = vmatprep.subr.bf16.mxu0 0
    %1132 = vmatpush1.bf16.msra.mxu0 0
    %1133 = vmatprep.subr.bf16.mxu0 0
    %1134 = vmatpush1.bf16.msra.mxu0 0
    %1135 = vmatprep.subr.bf16.mxu0 0
    %1136 = vmatpush1.bf16.msra.mxu0 %v1119
    %1137 = vmatprep.subr.bf16.mxu0 0
    %1138 = vmatpush2.bf16.msra.mxu0 0
    %1139 = vmatprep.subr.bf16.mxu0 0
    %1140 = vmatpush2.bf16.msra.mxu0 0
    %1141 = vmatprep.subr.bf16.mxu0 0
    %1142 = vmatpush2.bf16.msra.mxu0 0
    %1143 = vmatprep.subr.bf16.mxu0 0
    %1144 = vmatpush2.bf16.msra.mxu0 0
    %1145 = vmatprep.subr.bf16.mxu0 0
    %1146 = vmatpush2.bf16.msra.mxu0 0
    %1147 = vmatprep.subr.bf16.mxu0 0
    %1148 = vmatpush2.bf16.msra.mxu0 0
    %1149 = vmatprep.subr.bf16.mxu0 0
    %1150 = vmatpush2.bf16.msra.mxu0 0
    %1151 = vmatprep.subr.bf16.mxu0 0
    %1152 = vmatpush2.bf16.msra.mxu0 0
    %1153 = vmatprep.mubr.bf16.mxu0 0
    %1154 = vmatmul.mubr.bf16.gmra.mxu0 %v1116
    %v1155 = vpop.f32.mrf.mxu0
    %v1156 = vadd.f32 0.0, %v1155
    %v1157 = vpop.f32.mrf.mxu0
    %v1158 = vpop.f32.mrf.mxu0
    %v1159 = vpop.f32.mrf.mxu0
    %1160 = vdwg.mxu0
    %1161 = vrot.lane.b32.xlu0 %v172, 16
    %v1162 = vpop.permute.xlu0 %1161
    %v1164 = vsel %vm266, %v1112, 0
    %v1167 = vsel %vm296, %v1162, 0
    %1169 = vmatprep.subr.bf16.mxu0 0
    %1170 = vmatpush1.bf16.msra.mxu0 0
    %1171 = vmatprep.subr.bf16.mxu0 0
    %1172 = vmatpush1.bf16.msra.mxu0 0
    %1173 = vmatprep.subr.bf16.mxu0 0
    %1174 = vmatpush1.bf16.msra.mxu0 0
    %1175 = vmatprep.subr.bf16.mxu0 0
    %1176 = vmatpush1.bf16.msra.mxu0 0
    %1177 = vmatprep.subr.bf16.mxu0 0
    %1178 = vmatpush1.bf16.msra.mxu0 0
    %1179 = vmatprep.subr.bf16.mxu0 0
    %1180 = vmatpush1.bf16.msra.mxu0 0
    %1181 = vmatprep.subr.bf16.mxu0 0
    %1182 = vmatpush1.bf16.msra.mxu0 0
    %1183 = vmatprep.subr.bf16.mxu0 0
    %1184 = vmatpush1.bf16.msra.mxu0 %v1167
    %1185 = vmatprep.subr.bf16.mxu0 0
    %1186 = vmatpush2.bf16.msra.mxu0 0
    %1187 = vmatprep.subr.bf16.mxu0 0
    %1188 = vmatpush2.bf16.msra.mxu0 0
    %1189 = vmatprep.subr.bf16.mxu0 0
    %1190 = vmatpush2.bf16.msra.mxu0 0
    %1191 = vmatprep.subr.bf16.mxu0 0
    %1192 = vmatpush2.bf16.msra.mxu0 0
    %1193 = vmatprep.subr.bf16.mxu0 0
    %1194 = vmatpush2.bf16.msra.mxu0 0
    %1195 = vmatprep.subr.bf16.mxu0 0
    %1196 = vmatpush2.bf16.msra.mxu0 0
    %1197 = vmatprep.subr.bf16.mxu0 0
    %1198 = vmatpush2.bf16.msra.mxu0 0
    %1199 = vmatprep.subr.bf16.mxu0 0
    %1200 = vmatpush2.bf16.msra.mxu0 0
    %1201 = vmatprep.mubr.bf16.mxu0 0
    %1202 = vmatmul.mubr.bf16.gmra.mxu0 %v1164
    %v1203 = vpop.f32.mrf.mxu0
    %v1204 = vadd.f32 0.0, %v1203
    %v1205 = vpop.f32.mrf.mxu0
    %v1206 = vpop.f32.mrf.mxu0
    %v1207 = vpop.f32.mrf.mxu0
    %1208 = vdwg.mxu0
    %v1209 = vpack.c.bf16 %v1204, %v1156
    %v1210 = vld [vmem:[%s4 + $0x18] sm:$0xf]
    %v1211 = vld [vmem:[%s4 + $0x1c] sm:$0xf]
    %v1214 = vunpack.c.l.b16 %v1210
    %v1215 = vunpack.c.l.b16 %v1211
    %v1216 = vpack.c.b16 %v1215, %v1214
    %v1219 = vsel %vm173, %v1209, 0
    %1221 = vmatprep.subr.bf16.mxu0 0
    %1222 = vmatpush1.bf16.msra.mxu0 0
    %1223 = vmatprep.subr.bf16.mxu0 0
    %1224 = vmatpush1.bf16.msra.mxu0 0
    %1225 = vmatprep.subr.bf16.mxu0 0
    %1226 = vmatpush1.bf16.msra.mxu0 0
    %1227 = vmatprep.subr.bf16.mxu0 0
    %1228 = vmatpush1.bf16.msra.mxu0 0
    %1229 = vmatprep.subr.bf16.mxu0 0
    %1230 = vmatpush1.bf16.msra.mxu0 0
    %1231 = vmatprep.subr.bf16.mxu0 0
    %1232 = vmatpush1.bf16.msra.mxu0 0
    %1233 = vmatprep.subr.bf16.mxu0 0
    %1234 = vmatpush1.bf16.msra.mxu0 0
    %1235 = vmatprep.subr.bf16.mxu0 0
    %1236 = vmatpush1.bf16.msra.mxu0 %v1216
    %1237 = vmatprep.subr.bf16.mxu0 0
    %1238 = vmatpush2.bf16.msra.mxu0 0
    %1239 = vmatprep.subr.bf16.mxu0 0
    %1240 = vmatpush2.bf16.msra.mxu0 0
    %1241 = vmatprep.subr.bf16.mxu0 0
    %1242 = vmatpush2.bf16.msra.mxu0 0
    %1243 = vmatprep.subr.bf16.mxu0 0
    %1244 = vmatpush2.bf16.msra.mxu0 0
    %1245 = vmatprep.subr.bf16.mxu0 0
    %1246 = vmatpush2.bf16.msra.mxu0 0
    %1247 = vmatprep.subr.bf16.mxu0 0
    %1248 = vmatpush2.bf16.msra.mxu0 0
    %1249 = vmatprep.subr.bf16.mxu0 0
    %1250 = vmatpush2.bf16.msra.mxu0 0
    %1251 = vmatprep.subr.bf16.mxu0 0
    %1252 = vmatpush2.bf16.msra.mxu0 0
    %1253 = vmatprep.mubr.bf16.mxu0 0
    %1254 = vmatmul.mubr.bf16.gmra.mxu0 %v1219
    %v1255 = vpop.f32.mrf.mxu0
    %v1256 = vadd.f32 0.0, %v1255
    %v1257 = vpop.f32.mrf.mxu0
    %v1258 = vpop.f32.mrf.mxu0
    %v1259 = vadd.f32 0.0, %v1258
    %v1260 = vpop.f32.mrf.mxu0
    %1261 = vdwg.mxu0
    %v1262 = vadd.f32 %v987, %v1256
    %v1263 = vadd.f32 %v988, %v1259
    %v1265 = vlaneseq
    %v1266 = vshrl.u32 %v1265, 7
    %v1267 = vsub.s32 0, %v1266
    %v1268 = vrot.slane %v160, %v1267
    %v1270 = vadd.f32 %v1262, %v1268
    %v1271 = vadd.f32 %v1263, %v1268
    %1272 = vst.msk [vmem:[#allocation2] sm:$0xff] %vm48, %v1270
    %1273 = vst.msk [vmem:[#allocation2 + $0x8] sm:$0xff] %vm48, %v1271
    // Predicated region
    $region26: #{tpu_custom_call.1} parent=1 // pred_check
      _
    $region27: #{tpu_custom_call.1} parent=1 // pred_check_branch
      %1275 = sbr.rel (0) target = $region29
    $region28: #{tpu_custom_call.1} parent=1 // pred_region
      %s1277 = ssub.s32 256, 256
      %1278 = vsyncadd [#allocation3], %s1277
      %s1279 = sshll.u32 [#allocation2], 4
      %s1280 = int_to_ptr.vmem [resolvable:$true] %s1279
      %1285 = dma.vmem_to_hbm [thread:$0]  %s1280, 256, %s6, [#allocation3], 128, 128, 8
    $region29: #{tpu_custom_call.1} parent=1 // pred_fallthru
      _
    // Predicated region
    $region30: #{tpu_custom_call.1} parent=1 // pred_check
      _
    $region31: #{tpu_custom_call.1} parent=1 // pred_check_branch
      %1287 = sbr.rel (0) target = $region33
    $region32: #{tpu_custom_call.1} parent=1 // pred_region
      %1288 = dma.done [#allocation3], 256
    $region33: #{tpu_custom_call.1} parent=1 // pred_fallthru
      _
    %1289 = vsyncpa [#allocation3], 1

</llo_original>
